<compile_context>
chip_gen: v5e
topology: v5e:2x2
jax: 0.10.0
libtpu: 0.0.40
codegen_flags: <defaults>
</compile_context>

<pallas_src>
import functools

import jax
import jax.numpy as jnp
from jax.experimental import pallas as pl
from jax.experimental.pallas import tpu as pltpu


# ------------------------------ Pallas kernel ------------------------------- #

def _downsample_unit_kernel(xph_ref, s1_ref, t1_ref, w1_ref, t2_ref, w2_ref,
                            wd_ref, cm_ref, out_ref, ybuf, b2buf, *,
                            conv1_taps, conv2_taps, n_rows, toppad, cp):
    """Fused DownsampleUnit forward for one batch element (all VMEM-resident)."""
    f32, bf16 = jnp.float32, jnp.bfloat16

    # --- norm_act: BN1 + ReLU, written into zero-padded VMEM y buffers -------
    ybuf[...] = jnp.zeros_like(ybuf)
    s1 = s1_ref[...]
    t1 = t1_ref[...]
    n_phases = ybuf.shape[0]
    for p in range(n_phases):
        yp = jnp.maximum(xph_ref[0, p] * s1 + t1, 0.0)          # f32 epilogue
        ybuf[p, toppad:toppad + n_rows, :] = yp

    def masked(slab, rx):
        # zero out columns whose 3x3 source column falls outside the image
        if rx == 0:
            return slab
        return slab * cm_ref[0 if rx < 0 else 1]

    # --- block conv1 3x3(stride) with BN2 scale folded into weights, + ReLU --
    acc1 = jnp.zeros((n_rows, cp), dtype=f32)
    for t, (p, roff, rx) in enumerate(conv1_taps):
        slab = masked(ybuf[p, roff:roff + n_rows, :], rx).astype(bf16)
        acc1 = acc1 + jnp.dot(slab, w1_ref[t], preferred_element_type=f32)
    b2 = jnp.maximum(acc1 + t2_ref[...], 0.0)
    # TODO(synk): Dropout is the eval-mode identity (no stochastic mask).

    # --- block conv2 3x3(stride=1) over the VMEM-resident b2 -----------------
    b2buf[...] = jnp.zeros_like(b2buf)
    b2buf[toppad:toppad + n_rows, :] = b2
    acc2 = jnp.zeros((n_rows, cp), dtype=f32)
    for t, (roff, rx) in enumerate(conv2_taps):
        slab = masked(b2buf[roff:roff + n_rows, :], rx).astype(bf16)
        acc2 = acc2 + jnp.dot(slab, w2_ref[t], preferred_element_type=f32)

    # --- downsample 1x1 conv (stride folded into phase-0 sampling) + add -----
    dslab = ybuf[0, toppad:toppad + n_rows, :].astype(bf16)
    out_ref[0] = acc2 + jnp.dot(dslab, wd_ref[...], preferred_element_type=f32)


# ------------------------------ JAX wrapper --------------------------------- #

@functools.partial(jax.jit, static_argnames=("stride",))
def downsample_unit_forward(x_nchw, params, stride):
    x = jnp.transpose(x_nchw, (0, 2, 3, 1)).astype(jnp.float32)   # NCHW -> NHWC
    n, h, w, cin = x.shape
    cout = params["w1"].shape[0]
    cp = ((cout + 127) // 128) * 128                              # lane-dense Cout

    # ---- phase split of the input (handles the conv stride; pure relayout) --
    if stride == 2:
        assert h % 2 == 0 and w % 2 == 0
        ho, wo = h // 2, w // 2
        phases = [x[:, py::2, px::2, :] for py in range(2) for px in range(2)]
        xph = jnp.stack(phases, axis=1).reshape(n, 4, ho * wo, cin)
        p2 = 4
    elif stride == 1:
        ho, wo = h, w
        xph = x.reshape(n, 1, h * w, cin)
        p2 = 1
    else:
        raise NotImplementedError("DownsampleUnit kernel supports stride 1 or 2")

    howo = ho * wo
    toppad = wo + 1                       # zero rows padding the flat buffers
    yrows = howo + 2 * toppad

    # ---- fold BatchNorms (inference running stats) ---------------------------
    eps = 1e-5
    s1 = (params["gamma1"] / jnp.sqrt(params["var1"] + eps)).reshape(1, cin)
    t1 = (params["beta1"] - params["mean1"] * s1[0]).reshape(1, cin)
    s2 = params["gamma2"] / jnp.sqrt(params["var2"] + eps)        # (Cout,)
    t2v = params["beta2"] - params["mean2"] * s2                  # (Cout,)
    t2 = jnp.zeros((1, cp), jnp.float32).at[0, :cout].set(t2v)

    # ---- per-tap weight matrices (BN2 scale folded into w1), padded to Cp ----
    w1, w2, wd = params["w1"], params["w2"], params["wd"]
    w1_taps, w2_taps = [], []
    for dy in (-1, 0, 1):
        for dx in (-1, 0, 1):
            ky, kx = dy + 1, dx + 1
            m1 = jnp.transpose(w1[:, :, ky, kx]) * s2.reshape(1, cout)   # (Cin,Cout)
            w1_taps.append(jnp.zeros((cin, cp), jnp.float32).at[:, :cout].set(m1))
            m2 = jnp.transpose(w2[:, :, ky, kx])                          # (Cout,Cout)
            w2_taps.append(
                jnp.zeros((cp, cp), jnp.float32).at[:cout, :cout].set(m2))
    w1f = jnp.stack(w1_taps, 0).astype(jnp.bfloat16)              # (9, Cin, Cp)
    w2m = jnp.stack(w2_taps, 0).astype(jnp.bfloat16)              # (9, Cp, Cp)
    wdm = jnp.zeros((cin, cp), jnp.float32).at[:, :cout].set(
        jnp.transpose(wd[:, :, 0, 0])).astype(jnp.bfloat16)       # (Cin, Cp)

    # ---- column-boundary masks for shifted taps (left / right edge) ----------
    wo_idx = jnp.arange(howo, dtype=jnp.int32) % wo
    colmasks = jnp.stack(
        [(wo_idx != 0).astype(jnp.float32),
         (wo_idx != wo - 1).astype(jnp.float32)], axis=0).reshape(2, howo, 1)

    # ---- static tap descriptors: (phase, row offset in padded buffer, rx) ----
    conv1_taps, conv2_taps = [], []
    for dy in (-1, 0, 1):
        for dx in (-1, 0, 1):
            if stride == 2:
                p = (dy % 2) * 2 + (dx % 2)
                ry = -1 if dy == -1 else 0
                rx = -1 if dx == -1 else 0
            else:
                p, ry, rx = 0, dy, dx
            conv1_taps.append((p, toppad + ry * wo + rx, rx))
            conv2_taps.append((toppad + dy * wo + dx, dx))

    kernel = functools.partial(
        _downsample_unit_kernel,
        conv1_taps=tuple(conv1_taps), conv2_taps=tuple(conv2_taps),
        n_rows=howo, toppad=toppad, cp=cp)

    out3 = pl.pallas_call(
        kernel,
        out_shape=jax.ShapeDtypeStruct((n, howo, cp), jnp.float32),
        grid=(n,),
        in_specs=[
            pl.BlockSpec((1, p2, howo, cin), lambda i: (i, 0, 0, 0)),   # x phases
            pl.BlockSpec((1, cin), lambda i: (0, 0)),                   # BN1 scale
            pl.BlockSpec((1, cin), lambda i: (0, 0)),                   # BN1 shift
            pl.BlockSpec((9, cin, cp), lambda i: (0, 0, 0)),            # w1 (folded)
            pl.BlockSpec((1, cp), lambda i: (0, 0)),                    # BN2 shift
            pl.BlockSpec((9, cp, cp), lambda i: (0, 0, 0)),             # w2
            pl.BlockSpec((cin, cp), lambda i: (0, 0)),                  # wd (1x1)
            pl.BlockSpec((2, howo, 1), lambda i: (0, 0, 0)),            # col masks
        ],
        out_specs=pl.BlockSpec((1, howo, cp), lambda i: (i, 0, 0)),
        scratch_shapes=[
            pltpu.VMEM((p2, yrows, cin), jnp.float32),   # zero-padded y (phases)
            pltpu.VMEM((yrows, cp), jnp.float32),        # zero-padded b2
        ],
        compiler_params=pltpu.CompilerParams(dimension_semantics=("parallel",)),
    )(xph, s1, t1, w1f, t2, w2m, wdm, colmasks)

    out = out3[:, :, :cout].reshape(n, ho, wo, cout)
    return jnp.transpose(out, (0, 3, 1, 2))                        # back to NCHW


# ------------------------- pure-JAX reference (f32) ------------------------- #

def _reference_forward(x_nchw, params, stride):
    x = x_nchw.astype(jnp.float32)
    eps = 1e-5
    s1 = params["gamma1"] / jnp.sqrt(params["var1"] + eps)
    t1 = params["beta1"] - params["mean1"] * s1
    y = jnp.maximum(x * s1[None, :, None, None] + t1[None, :, None, None], 0.0)

    def conv(inp, wgt, s, pad):
        return jax.lax.conv_general_dilated(
            inp, wgt, (s, s), [(pad, pad), (pad, pad)],
            dimension_numbers=("NCHW", "OIHW", "NCHW"))

    c1 = conv(y, params["w1"], stride, 1)
    s2 = params["gamma2"] / jnp.sqrt(params["var2"] + eps)
    t2 = params["beta2"] - params["mean2"] * s2
    b2 = jnp.maximum(c1 * s2[None, :, None, None] + t2[None, :, None, None], 0.0)
    c2 = conv(b2, params["w2"], 1, 1)
    d = conv(y, params["wd"], stride, 0)
    return c2 + d


# --------------------------------- main -------------------------------------- #

if __name__ == "__main__":
    N, Cin, H, W = 2, 4, 16, 16
    Cout, stride, dropout = 8, 2, 0.1   # dropout unused (eval-mode identity)

    key = jax.random.PRNGKey(0)
    ks = jax.random.split(key, 14)

    x = jax.random.normal(ks[0], (N, Cin, H, W), jnp.float32)

    params = {
        # norm_act BatchNorm2d(in_channels)
        "gamma1": 1.0 + 0.1 * jax.random.normal(ks[1], (Cin,), jnp.float32),
        "beta1": 0.1 * jax.random.normal(ks[2], (Cin,), jnp.float32),
        "mean1": 0.05 * jax.random.normal(ks[3], (Cin,), jnp.float32),
        "var1": 1.0 + 0.1 * jnp.abs(jax.random.normal(ks[4], (Cin,), jnp.float32)),
        # block 0_convolution: Conv2d(in, out, 3, stride, pad=1, bias=False)
        "w1": 0.1 * jax.random.normal(ks[5], (Cout, Cin, 3, 3), jnp.float32),
        # block 1_normalization: BatchNorm2d(out_channels)
        "gamma2": 1.0 + 0.1 * jax.random.normal(ks[6], (Cout,), jnp.float32),
        "beta2": 0.1 * jax.random.normal(ks[7], (Cout,), jnp.float32),
        "mean2": 0.05 * jax.random.normal(ks[8], (Cout,), jnp.float32),
        "var2": 1.0 + 0.1 * jnp.abs(jax.random.normal(ks[9], (Cout,), jnp.float32)),
        # block 4_convolution: Conv2d(out, out, 3, stride=1, pad=1, bias=False)
        "w2": 0.1 * jax.random.normal(ks[10], (Cout, Cout, 3, 3), jnp.float32),
        # downsample: Conv2d(in, out, 1, stride, bias=False)
        "wd": 0.1 * jax.random.normal(ks[11], (Cout, Cin, 1, 1), jnp.float32),
    }

    out = downsample_unit_forward(x, params, stride)
    out = jax.block_until_ready(out)

    expected_shape = (N, Cout, H // stride, W // stride)
    assert out.shape == expected_shape, (out.shape, expected_shape)
    assert bool(jnp.all(jnp.isfinite(out)))

    # correctness vs. a pure-JAX f32 reference (bf16 matmul inputs -> loose tol)
    ref = jax.block_until_ready(_reference_forward(x, params, stride))
    max_err = float(jnp.max(jnp.abs(out - ref)))
    assert max_err < 5e-2, f"max abs error vs reference: {max_err}"

    print("KERNEL_OK")
</pallas_src>

<mosaic_0001>
module attributes {stable_mosaic.version = 11 : i64} {
  func.func @_downsample_unit_kernel(%arg0: i32, %arg1: memref<1x4x64x4xf32, #tpu.memory_space<vmem>>, %arg2: memref<1x4xf32, #tpu.memory_space<vmem>>, %arg3: memref<1x4xf32, #tpu.memory_space<vmem>>, %arg4: memref<9x4x128xbf16, #tpu.memory_space<vmem>>, %arg5: memref<1x128xf32, #tpu.memory_space<vmem>>, %arg6: memref<9x128x128xbf16, #tpu.memory_space<vmem>>, %arg7: memref<4x128xbf16, #tpu.memory_space<vmem>>, %arg8: memref<2x64x1xf32, #tpu.memory_space<vmem>>, %arg9: memref<1x64x128xf32, #tpu.memory_space<vmem>>, %arg10: memref<4x82x4xf32, #tpu.memory_space<vmem>>, %arg11: memref<82x128xf32, #tpu.memory_space<vmem>>) attributes {dimension_semantics = [#tpu.dimension_semantics<parallel>], iteration_bounds = array<i64: 2>, scalar_prefetch = 0 : i64, scratch_operands = 2 : i64, tpu.core_type = #tpu.core_type<tc>, window_params = [{transform_indices = @transform_0, window_bounds = array<i64: 1, 4, 64, 4>}, {pipeline_mode = #tpu.pipeline_mode<synchronous>, transform_indices = @transform_1, window_bounds = array<i64: 1, 4>}, {pipeline_mode = #tpu.pipeline_mode<synchronous>, transform_indices = @transform_2, window_bounds = array<i64: 1, 4>}, {pipeline_mode = #tpu.pipeline_mode<synchronous>, transform_indices = @transform_3, window_bounds = array<i64: 9, 4, 128>}, {pipeline_mode = #tpu.pipeline_mode<synchronous>, transform_indices = @transform_4, window_bounds = array<i64: 1, 128>}, {pipeline_mode = #tpu.pipeline_mode<synchronous>, transform_indices = @transform_5, window_bounds = array<i64: 9, 128, 128>}, {pipeline_mode = #tpu.pipeline_mode<synchronous>, transform_indices = @transform_6, window_bounds = array<i64: 4, 128>}, {pipeline_mode = #tpu.pipeline_mode<synchronous>, transform_indices = @transform_7, window_bounds = array<i64: 2, 64, 1>}, {transform_indices = @transform_8, window_bounds = array<i64: 1, 64, 128>}]} {
    %cst = arith.constant 0.000000e+00 : f32
    %0 = vector.broadcast %cst : f32 to vector<4x82x4xf32>
    %c0 = arith.constant 0 : index
    %c0_0 = arith.constant 0 : index
    %c0_1 = arith.constant 0 : index
    %1 = vector.load %arg10[%c0, %c0_0, %c0_1] : memref<4x82x4xf32, #tpu.memory_space<vmem>>, vector<4x82x4xf32>
    tpu.vector_store %arg10[%c0, %c0_0, %c0_1], %0 {strides = array<i32>} : memref<4x82x4xf32, #tpu.memory_space<vmem>>, vector<4x82x4xf32>,
    %c0_2 = arith.constant 0 : index
    %c0_3 = arith.constant 0 : index
    %2 = vector.load %arg2[%c0_2, %c0_3] : memref<1x4xf32, #tpu.memory_space<vmem>>, vector<1x4xf32>
    %c0_4 = arith.constant 0 : index
    %c0_5 = arith.constant 0 : index
    %3 = vector.load %arg3[%c0_4, %c0_5] : memref<1x4xf32, #tpu.memory_space<vmem>>, vector<1x4xf32>
    %c0_6 = arith.constant 0 : index
    %c0_7 = arith.constant 0 : index
    %c0_8 = arith.constant 0 : index
    %c0_9 = arith.constant 0 : index
    %4 = vector.load %arg1[%c0_6, %c0_7, %c0_8, %c0_9] : memref<1x4x64x4xf32, #tpu.memory_space<vmem>>, vector<1x1x64x4xf32>
    %5 = vector.shape_cast %4 : vector<1x1x64x4xf32> to vector<64x4xf32>
    %6 = vector.broadcast %2 : vector<1x4xf32> to vector<64x4xf32>
    %7 = arith.mulf %5, %6 : vector<64x4xf32>
    %8 = vector.broadcast %3 : vector<1x4xf32> to vector<64x4xf32>
    %9 = arith.addf %7, %8 : vector<64x4xf32>
    %cst_10 = arith.constant 0.000000e+00 : f32
    %10 = vector.broadcast %cst_10 : f32 to vector<64x4xf32>
    %11 = arith.maximumf %9, %10 : vector<64x4xf32>
    %c0_11 = arith.constant 0 : index
    %c9 = arith.constant 9 : index
    %c0_12 = arith.constant 0 : index
    %12 = vector.load %arg10[%c0_11, %c9, %c0_12] : memref<4x82x4xf32, #tpu.memory_space<vmem>>, vector<1x64x4xf32>
    %13 = vector.shape_cast %12 : vector<1x64x4xf32> to vector<64x4xf32>
    %14 = vector.shape_cast %11 : vector<64x4xf32> to vector<1x64x4xf32>
    tpu.vector_store %arg10[%c0_11, %c9, %c0_12], %14 {strides = array<i32>} : memref<4x82x4xf32, #tpu.memory_space<vmem>>, vector<1x64x4xf32>,
    %c0_13 = arith.constant 0 : index
    %c1 = arith.constant 1 : index
    %c0_14 = arith.constant 0 : index
    %c0_15 = arith.constant 0 : index
    %15 = vector.load %arg1[%c0_13, %c1, %c0_14, %c0_15] : memref<1x4x64x4xf32, #tpu.memory_space<vmem>>, vector<1x1x64x4xf32>
    %16 = vector.shape_cast %15 : vector<1x1x64x4xf32> to vector<64x4xf32>
    %17 = vector.broadcast %2 : vector<1x4xf32> to vector<64x4xf32>
    %18 = arith.mulf %16, %17 : vector<64x4xf32>
    %19 = vector.broadcast %3 : vector<1x4xf32> to vector<64x4xf32>
    %20 = arith.addf %18, %19 : vector<64x4xf32>
    %cst_16 = arith.constant 0.000000e+00 : f32
    %21 = vector.broadcast %cst_16 : f32 to vector<64x4xf32>
    %22 = arith.maximumf %20, %21 : vector<64x4xf32>
    %c1_17 = arith.constant 1 : index
    %c9_18 = arith.constant 9 : index
    %c0_19 = arith.constant 0 : index
    %23 = vector.load %arg10[%c1_17, %c9_18, %c0_19] : memref<4x82x4xf32, #tpu.memory_space<vmem>>, vector<1x64x4xf32>
    %24 = vector.shape_cast %23 : vector<1x64x4xf32> to vector<64x4xf32>
    %25 = vector.shape_cast %22 : vector<64x4xf32> to vector<1x64x4xf32>
    tpu.vector_store %arg10[%c1_17, %c9_18, %c0_19], %25 {strides = array<i32>} : memref<4x82x4xf32, #tpu.memory_space<vmem>>, vector<1x64x4xf32>,
    %c0_20 = arith.constant 0 : index
    %c2 = arith.constant 2 : index
    %c0_21 = arith.constant 0 : index
    %c0_22 = arith.constant 0 : index
    %26 = vector.load %arg1[%c0_20, %c2, %c0_21, %c0_22] : memref<1x4x64x4xf32, #tpu.memory_space<vmem>>, vector<1x1x64x4xf32>
    %27 = vector.shape_cast %26 : vector<1x1x64x4xf32> to vector<64x4xf32>
    %28 = vector.broadcast %2 : vector<1x4xf32> to vector<64x4xf32>
    %29 = arith.mulf %27, %28 : vector<64x4xf32>
    %30 = vector.broadcast %3 : vector<1x4xf32> to vector<64x4xf32>
    %31 = arith.addf %29, %30 : vector<64x4xf32>
    %cst_23 = arith.constant 0.000000e+00 : f32
    %32 = vector.broadcast %cst_23 : f32 to vector<64x4xf32>
    %33 = arith.maximumf %31, %32 : vector<64x4xf32>
    %c2_24 = arith.constant 2 : index
    %c9_25 = arith.constant 9 : index
    %c0_26 = arith.constant 0 : index
    %34 = vector.load %arg10[%c2_24, %c9_25, %c0_26] : memref<4x82x4xf32, #tpu.memory_space<vmem>>, vector<1x64x4xf32>
    %35 = vector.shape_cast %34 : vector<1x64x4xf32> to vector<64x4xf32>
    %36 = vector.shape_cast %33 : vector<64x4xf32> to vector<1x64x4xf32>
    tpu.vector_store %arg10[%c2_24, %c9_25, %c0_26], %36 {strides = array<i32>} : memref<4x82x4xf32, #tpu.memory_space<vmem>>, vector<1x64x4xf32>,
    %c0_27 = arith.constant 0 : index
    %c3 = arith.constant 3 : index
    %c0_28 = arith.constant 0 : index
    %c0_29 = arith.constant 0 : index
    %37 = vector.load %arg1[%c0_27, %c3, %c0_28, %c0_29] : memref<1x4x64x4xf32, #tpu.memory_space<vmem>>, vector<1x1x64x4xf32>
    %38 = vector.shape_cast %37 : vector<1x1x64x4xf32> to vector<64x4xf32>
    %39 = vector.broadcast %2 : vector<1x4xf32> to vector<64x4xf32>
    %40 = arith.mulf %38, %39 : vector<64x4xf32>
    %41 = vector.broadcast %3 : vector<1x4xf32> to vector<64x4xf32>
    %42 = arith.addf %40, %41 : vector<64x4xf32>
    %cst_30 = arith.constant 0.000000e+00 : f32
    %43 = vector.broadcast %cst_30 : f32 to vector<64x4xf32>
    %44 = arith.maximumf %42, %43 : vector<64x4xf32>
    %c3_31 = arith.constant 3 : index
    %c9_32 = arith.constant 9 : index
    %c0_33 = arith.constant 0 : index
    %45 = vector.load %arg10[%c3_31, %c9_32, %c0_33] : memref<4x82x4xf32, #tpu.memory_space<vmem>>, vector<1x64x4xf32>
    %46 = vector.shape_cast %45 : vector<1x64x4xf32> to vector<64x4xf32>
    %47 = vector.shape_cast %44 : vector<64x4xf32> to vector<1x64x4xf32>
    tpu.vector_store %arg10[%c3_31, %c9_32, %c0_33], %47 {strides = array<i32>} : memref<4x82x4xf32, #tpu.memory_space<vmem>>, vector<1x64x4xf32>,
    %cst_34 = arith.constant 0.000000e+00 : f32
    %48 = vector.broadcast %cst_34 : f32 to vector<64x128xf32>
    %c3_35 = arith.constant 3 : index
    %c0_36 = arith.constant 0 : index
    %c0_37 = arith.constant 0 : index
    %49 = vector.load %arg10[%c3_35, %c0_36, %c0_37] : memref<4x82x4xf32, #tpu.memory_space<vmem>>, vector<1x64x4xf32>
    %50 = vector.shape_cast %49 : vector<1x64x4xf32> to vector<64x4xf32>
    %c0_38 = arith.constant 0 : index
    %c0_39 = arith.constant 0 : index
    %c0_40 = arith.constant 0 : index
    %51 = vector.load %arg8[%c0_38, %c0_39, %c0_40] : memref<2x64x1xf32, #tpu.memory_space<vmem>>, vector<1x64x1xf32>
    %52 = vector.shape_cast %51 : vector<1x64x1xf32> to vector<64x1xf32>
    %53 = vector.broadcast %52 : vector<64x1xf32> to vector<64x4xf32>
    %54 = arith.mulf %50, %53 : vector<64x4xf32>
    %55 = arith.truncf %54 : vector<64x4xf32> to vector<64x4xbf16>
    %c0_41 = arith.constant 0 : index
    %c0_42 = arith.constant 0 : index
    %c0_43 = arith.constant 0 : index
    %56 = vector.load %arg4[%c0_41, %c0_42, %c0_43] : memref<9x4x128xbf16, #tpu.memory_space<vmem>>, vector<1x4x128xbf16>
    %57 = vector.shape_cast %56 : vector<1x4x128xbf16> to vector<4x128xbf16>
    %cst_44 = arith.constant dense<0.000000e+00> : vector<64x128xf32>
    %58 = tpu.matmul %55, %57, %cst_44 {dimension_numbers = #tpu.dot_dimension_numbers<[1], [0], [0], [1], [0, 0, 1, 1], [], []>} : vector<64x4xbf16>, vector<4x128xbf16>, vector<64x128xf32> -> vector<64x128xf32>
    %59 = arith.addf %48, %58 : vector<64x128xf32>
    %c2_45 = arith.constant 2 : index
    %c1_46 = arith.constant 1 : index
    %c0_47 = arith.constant 0 : index
    %60 = vector.load %arg10[%c2_45, %c1_46, %c0_47] : memref<4x82x4xf32, #tpu.memory_space<vmem>>, vector<1x64x4xf32>
    %61 = vector.shape_cast %60 : vector<1x64x4xf32> to vector<64x4xf32>
    %62 = arith.truncf %61 : vector<64x4xf32> to vector<64x4xbf16>
    %c1_48 = arith.constant 1 : index
    %c0_49 = arith.constant 0 : index
    %c0_50 = arith.constant 0 : index
    %63 = vector.load %arg4[%c1_48, %c0_49, %c0_50] : memref<9x4x128xbf16, #tpu.memory_space<vmem>>, vector<1x4x128xbf16>
    %64 = vector.shape_cast %63 : vector<1x4x128xbf16> to vector<4x128xbf16>
    %cst_51 = arith.constant dense<0.000000e+00> : vector<64x128xf32>
    %65 = tpu.matmul %62, %64, %cst_51 {dimension_numbers = #tpu.dot_dimension_numbers<[1], [0], [0], [1], [0, 0, 1, 1], [], []>} : vector<64x4xbf16>, vector<4x128xbf16>, vector<64x128xf32> -> vector<64x128xf32>
    %66 = arith.addf %59, %65 : vector<64x128xf32>
    %c3_52 = arith.constant 3 : index
    %c1_53 = arith.constant 1 : index
    %c0_54 = arith.constant 0 : index
    %67 = vector.load %arg10[%c3_52, %c1_53, %c0_54] : memref<4x82x4xf32, #tpu.memory_space<vmem>>, vector<1x64x4xf32>
    %68 = vector.shape_cast %67 : vector<1x64x4xf32> to vector<64x4xf32>
    %69 = arith.truncf %68 : vector<64x4xf32> to vector<64x4xbf16>
    %c2_55 = arith.constant 2 : index
    %c0_56 = arith.constant 0 : index
    %c0_57 = arith.constant 0 : index
    %70 = vector.load %arg4[%c2_55, %c0_56, %c0_57] : memref<9x4x128xbf16, #tpu.memory_space<vmem>>, vector<1x4x128xbf16>
    %71 = vector.shape_cast %70 : vector<1x4x128xbf16> to vector<4x128xbf16>
    %cst_58 = arith.constant dense<0.000000e+00> : vector<64x128xf32>
    %72 = tpu.matmul %69, %71, %cst_58 {dimension_numbers = #tpu.dot_dimension_numbers<[1], [0], [0], [1], [0, 0, 1, 1], [], []>} : vector<64x4xbf16>, vector<4x128xbf16>, vector<64x128xf32> -> vector<64x128xf32>
    %73 = arith.addf %66, %72 : vector<64x128xf32>
    %c1_59 = arith.constant 1 : index
    %c8 = arith.constant 8 : index
    %c0_60 = arith.constant 0 : index
    %74 = vector.load %arg10[%c1_59, %c8, %c0_60] : memref<4x82x4xf32, #tpu.memory_space<vmem>>, vector<1x64x4xf32>
    %75 = vector.shape_cast %74 : vector<1x64x4xf32> to vector<64x4xf32>
    %c0_61 = arith.constant 0 : index
    %c0_62 = arith.constant 0 : index
    %c0_63 = arith.constant 0 : index
    %76 = vector.load %arg8[%c0_61, %c0_62, %c0_63] : memref<2x64x1xf32, #tpu.memory_space<vmem>>, vector<1x64x1xf32>
    %77 = vector.shape_cast %76 : vector<1x64x1xf32> to vector<64x1xf32>
    %78 = vector.broadcast %77 : vector<64x1xf32> to vector<64x4xf32>
    %79 = arith.mulf %75, %78 : vector<64x4xf32>
    %80 = arith.truncf %79 : vector<64x4xf32> to vector<64x4xbf16>
    %c3_64 = arith.constant 3 : index
    %c0_65 = arith.constant 0 : index
    %c0_66 = arith.constant 0 : index
    %81 = vector.load %arg4[%c3_64, %c0_65, %c0_66] : memref<9x4x128xbf16, #tpu.memory_space<vmem>>, vector<1x4x128xbf16>
    %82 = vector.shape_cast %81 : vector<1x4x128xbf16> to vector<4x128xbf16>
    %cst_67 = arith.constant dense<0.000000e+00> : vector<64x128xf32>
    %83 = tpu.matmul %80, %82, %cst_67 {dimension_numbers = #tpu.dot_dimension_numbers<[1], [0], [0], [1], [0, 0, 1, 1], [], []>} : vector<64x4xbf16>, vector<4x128xbf16>, vector<64x128xf32> -> vector<64x128xf32>
    %84 = arith.addf %73, %83 : vector<64x128xf32>
    %c0_68 = arith.constant 0 : index
    %c9_69 = arith.constant 9 : index
    %c0_70 = arith.constant 0 : index
    %85 = vector.load %arg10[%c0_68, %c9_69, %c0_70] : memref<4x82x4xf32, #tpu.memory_space<vmem>>, vector<1x64x4xf32>
    %86 = vector.shape_cast %85 : vector<1x64x4xf32> to vector<64x4xf32>
    %87 = arith.truncf %86 : vector<64x4xf32> to vector<64x4xbf16>
    %c4 = arith.constant 4 : index
    %c0_71 = arith.constant 0 : index
    %c0_72 = arith.constant 0 : index
    %88 = vector.load %arg4[%c4, %c0_71, %c0_72] : memref<9x4x128xbf16, #tpu.memory_space<vmem>>, vector<1x4x128xbf16>
    %89 = vector.shape_cast %88 : vector<1x4x128xbf16> to vector<4x128xbf16>
    %cst_73 = arith.constant dense<0.000000e+00> : vector<64x128xf32>
    %90 = tpu.matmul %87, %89, %cst_73 {dimension_numbers = #tpu.dot_dimension_numbers<[1], [0], [0], [1], [0, 0, 1, 1], [], []>} : vector<64x4xbf16>, vector<4x128xbf16>, vector<64x128xf32> -> vector<64x128xf32>
    %91 = arith.addf %84, %90 : vector<64x128xf32>
    %c1_74 = arith.constant 1 : index
    %c9_75 = arith.constant 9 : index
    %c0_76 = arith.constant 0 : index
    %92 = vector.load %arg10[%c1_74, %c9_75, %c0_76] : memref<4x82x4xf32, #tpu.memory_space<vmem>>, vector<1x64x4xf32>
    %93 = vector.shape_cast %92 : vector<1x64x4xf32> to vector<64x4xf32>
    %94 = arith.truncf %93 : vector<64x4xf32> to vector<64x4xbf16>
    %c5 = arith.constant 5 : index
    %c0_77 = arith.constant 0 : index
    %c0_78 = arith.constant 0 : index
    %95 = vector.load %arg4[%c5, %c0_77, %c0_78] : memref<9x4x128xbf16, #tpu.memory_space<vmem>>, vector<1x4x128xbf16>
    %96 = vector.shape_cast %95 : vector<1x4x128xbf16> to vector<4x128xbf16>
    %cst_79 = arith.constant dense<0.000000e+00> : vector<64x128xf32>
    %97 = tpu.matmul %94, %96, %cst_79 {dimension_numbers = #tpu.dot_dimension_numbers<[1], [0], [0], [1], [0, 0, 1, 1], [], []>} : vector<64x4xbf16>, vector<4x128xbf16>, vector<64x128xf32> -> vector<64x128xf32>
    %98 = arith.addf %91, %97 : vector<64x128xf32>
    %c3_80 = arith.constant 3 : index
    %c8_81 = arith.constant 8 : index
    %c0_82 = arith.constant 0 : index
    %99 = vector.load %arg10[%c3_80, %c8_81, %c0_82] : memref<4x82x4xf32, #tpu.memory_space<vmem>>, vector<1x64x4xf32>
    %100 = vector.shape_cast %99 : vector<1x64x4xf32> to vector<64x4xf32>
    %c0_83 = arith.constant 0 : index
    %c0_84 = arith.constant 0 : index
    %c0_85 = arith.constant 0 : index
    %101 = vector.load %arg8[%c0_83, %c0_84, %c0_85] : memref<2x64x1xf32, #tpu.memory_space<vmem>>, vector<1x64x1xf32>
    %102 = vector.shape_cast %101 : vector<1x64x1xf32> to vector<64x1xf32>
    %103 = vector.broadcast %102 : vector<64x1xf32> to vector<64x4xf32>
    %104 = arith.mulf %100, %103 : vector<64x4xf32>
    %105 = arith.truncf %104 : vector<64x4xf32> to vector<64x4xbf16>
    %c6 = arith.constant 6 : index
    %c0_86 = arith.constant 0 : index
    %c0_87 = arith.constant 0 : index
    %106 = vector.load %arg4[%c6, %c0_86, %c0_87] : memref<9x4x128xbf16, #tpu.memory_space<vmem>>, vector<1x4x128xbf16>
    %107 = vector.shape_cast %106 : vector<1x4x128xbf16> to vector<4x128xbf16>
    %cst_88 = arith.constant dense<0.000000e+00> : vector<64x128xf32>
    %108 = tpu.matmul %105, %107, %cst_88 {dimension_numbers = #tpu.dot_dimension_numbers<[1], [0], [0], [1], [0, 0, 1, 1], [], []>} : vector<64x4xbf16>, vector<4x128xbf16>, vector<64x128xf32> -> vector<64x128xf32>
    %109 = arith.addf %98, %108 : vector<64x128xf32>
    %c2_89 = arith.constant 2 : index
    %c9_90 = arith.constant 9 : index
    %c0_91 = arith.constant 0 : index
    %110 = vector.load %arg10[%c2_89, %c9_90, %c0_91] : memref<4x82x4xf32, #tpu.memory_space<vmem>>, vector<1x64x4xf32>
    %111 = vector.shape_cast %110 : vector<1x64x4xf32> to vector<64x4xf32>
    %112 = arith.truncf %111 : vector<64x4xf32> to vector<64x4xbf16>
    %c7 = arith.constant 7 : index
    %c0_92 = arith.constant 0 : index
    %c0_93 = arith.constant 0 : index
    %113 = vector.load %arg4[%c7, %c0_92, %c0_93] : memref<9x4x128xbf16, #tpu.memory_space<vmem>>, vector<1x4x128xbf16>
    %114 = vector.shape_cast %113 : vector<1x4x128xbf16> to vector<4x128xbf16>
    %cst_94 = arith.constant dense<0.000000e+00> : vector<64x128xf32>
    %115 = tpu.matmul %112, %114, %cst_94 {dimension_numbers = #tpu.dot_dimension_numbers<[1], [0], [0], [1], [0, 0, 1, 1], [], []>} : vector<64x4xbf16>, vector<4x128xbf16>, vector<64x128xf32> -> vector<64x128xf32>
    %116 = arith.addf %109, %115 : vector<64x128xf32>
    %c3_95 = arith.constant 3 : index
    %c9_96 = arith.constant 9 : index
    %c0_97 = arith.constant 0 : index
    %117 = vector.load %arg10[%c3_95, %c9_96, %c0_97] : memref<4x82x4xf32, #tpu.memory_space<vmem>>, vector<1x64x4xf32>
    %118 = vector.shape_cast %117 : vector<1x64x4xf32> to vector<64x4xf32>
    %119 = arith.truncf %118 : vector<64x4xf32> to vector<64x4xbf16>
    %c8_98 = arith.constant 8 : index
    %c0_99 = arith.constant 0 : index
    %c0_100 = arith.constant 0 : index
    %120 = vector.load %arg4[%c8_98, %c0_99, %c0_100] : memref<9x4x128xbf16, #tpu.memory_space<vmem>>, vector<1x4x128xbf16>
    %121 = vector.shape_cast %120 : vector<1x4x128xbf16> to vector<4x128xbf16>
    %cst_101 = arith.constant dense<0.000000e+00> : vector<64x128xf32>
    %122 = tpu.matmul %119, %121, %cst_101 {dimension_numbers = #tpu.dot_dimension_numbers<[1], [0], [0], [1], [0, 0, 1, 1], [], []>} : vector<64x4xbf16>, vector<4x128xbf16>, vector<64x128xf32> -> vector<64x128xf32>
    %123 = arith.addf %116, %122 : vector<64x128xf32>
    %c0_102 = arith.constant 0 : index
    %c0_103 = arith.constant 0 : index
    %124 = vector.load %arg5[%c0_102, %c0_103] : memref<1x128xf32, #tpu.memory_space<vmem>>, vector<1x128xf32>
    %125 = vector.broadcast %124 : vector<1x128xf32> to vector<64x128xf32>
    %126 = arith.addf %123, %125 : vector<64x128xf32>
    %cst_104 = arith.constant 0.000000e+00 : f32
    %127 = vector.broadcast %cst_104 : f32 to vector<64x128xf32>
    %128 = arith.maximumf %126, %127 : vector<64x128xf32>
    %cst_105 = arith.constant 0.000000e+00 : f32
    %129 = vector.broadcast %cst_105 : f32 to vector<82x128xf32>
    %c0_106 = arith.constant 0 : index
    %c0_107 = arith.constant 0 : index
    %130 = vector.load %arg11[%c0_106, %c0_107] : memref<82x128xf32, #tpu.memory_space<vmem>>, vector<82x128xf32>
    tpu.vector_store %arg11[%c0_106, %c0_107], %129 {strides = array<i32>} : memref<82x128xf32, #tpu.memory_space<vmem>>, vector<82x128xf32>,
    %c9_108 = arith.constant 9 : index
    %c0_109 = arith.constant 0 : index
    %131 = vector.load %arg11[%c9_108, %c0_109] : memref<82x128xf32, #tpu.memory_space<vmem>>, vector<64x128xf32>
    tpu.vector_store %arg11[%c9_108, %c0_109], %128 {strides = array<i32>} : memref<82x128xf32, #tpu.memory_space<vmem>>, vector<64x128xf32>,
    %cst_110 = arith.constant 0.000000e+00 : f32
    %132 = vector.broadcast %cst_110 : f32 to vector<64x128xf32>
    %c0_111 = arith.constant 0 : index
    %c0_112 = arith.constant 0 : index
    %133 = vector.load %arg11[%c0_111, %c0_112] : memref<82x128xf32, #tpu.memory_space<vmem>>, vector<64x128xf32>
    %c0_113 = arith.constant 0 : index
    %c0_114 = arith.constant 0 : index
    %c0_115 = arith.constant 0 : index
    %134 = vector.load %arg8[%c0_113, %c0_114, %c0_115] : memref<2x64x1xf32, #tpu.memory_space<vmem>>, vector<1x64x1xf32>
    %135 = vector.shape_cast %134 : vector<1x64x1xf32> to vector<64x1xf32>
    %136 = vector.broadcast %135 : vector<64x1xf32> to vector<64x128xf32>
    %137 = arith.mulf %133, %136 : vector<64x128xf32>
    %138 = arith.truncf %137 : vector<64x128xf32> to vector<64x128xbf16>
    %c0_116 = arith.constant 0 : index
    %c0_117 = arith.constant 0 : index
    %c0_118 = arith.constant 0 : index
    %139 = vector.load %arg6[%c0_116, %c0_117, %c0_118] : memref<9x128x128xbf16, #tpu.memory_space<vmem>>, vector<1x128x128xbf16>
    %140 = vector.shape_cast %139 : vector<1x128x128xbf16> to vector<128x128xbf16>
    %cst_119 = arith.constant dense<0.000000e+00> : vector<64x128xf32>
    %141 = tpu.matmul %138, %140, %cst_119 {dimension_numbers = #tpu.dot_dimension_numbers<[1], [0], [0], [1], [0, 0, 1, 1], [], []>} : vector<64x128xbf16>, vector<128x128xbf16>, vector<64x128xf32> -> vector<64x128xf32>
    %142 = arith.addf %132, %141 : vector<64x128xf32>
    %c1_120 = arith.constant 1 : index
    %c0_121 = arith.constant 0 : index
    %143 = vector.load %arg11[%c1_120, %c0_121] : memref<82x128xf32, #tpu.memory_space<vmem>>, vector<64x128xf32>
    %144 = arith.truncf %143 : vector<64x128xf32> to vector<64x128xbf16>
    %c1_122 = arith.constant 1 : index
    %c0_123 = arith.constant 0 : index
    %c0_124 = arith.constant 0 : index
    %145 = vector.load %arg6[%c1_122, %c0_123, %c0_124] : memref<9x128x128xbf16, #tpu.memory_space<vmem>>, vector<1x128x128xbf16>
    %146 = vector.shape_cast %145 : vector<1x128x128xbf16> to vector<128x128xbf16>
    %cst_125 = arith.constant dense<0.000000e+00> : vector<64x128xf32>
    %147 = tpu.matmul %144, %146, %cst_125 {dimension_numbers = #tpu.dot_dimension_numbers<[1], [0], [0], [1], [0, 0, 1, 1], [], []>} : vector<64x128xbf16>, vector<128x128xbf16>, vector<64x128xf32> -> vector<64x128xf32>
    %148 = arith.addf %142, %147 : vector<64x128xf32>
    %c2_126 = arith.constant 2 : index
    %c0_127 = arith.constant 0 : index
    %149 = vector.load %arg11[%c2_126, %c0_127] : memref<82x128xf32, #tpu.memory_space<vmem>>, vector<64x128xf32>
    %c1_128 = arith.constant 1 : index
    %c0_129 = arith.constant 0 : index
    %c0_130 = arith.constant 0 : index
    %150 = vector.load %arg8[%c1_128, %c0_129, %c0_130] : memref<2x64x1xf32, #tpu.memory_space<vmem>>, vector<1x64x1xf32>
    %151 = vector.shape_cast %150 : vector<1x64x1xf32> to vector<64x1xf32>
    %152 = vector.broadcast %151 : vector<64x1xf32> to vector<64x128xf32>
    %153 = arith.mulf %149, %152 : vector<64x128xf32>
    %154 = arith.truncf %153 : vector<64x128xf32> to vector<64x128xbf16>
    %c2_131 = arith.constant 2 : index
    %c0_132 = arith.constant 0 : index
    %c0_133 = arith.constant 0 : index
    %155 = vector.load %arg6[%c2_131, %c0_132, %c0_133] : memref<9x128x128xbf16, #tpu.memory_space<vmem>>, vector<1x128x128xbf16>
    %156 = vector.shape_cast %155 : vector<1x128x128xbf16> to vector<128x128xbf16>
    %cst_134 = arith.constant dense<0.000000e+00> : vector<64x128xf32>
    %157 = tpu.matmul %154, %156, %cst_134 {dimension_numbers = #tpu.dot_dimension_numbers<[1], [0], [0], [1], [0, 0, 1, 1], [], []>} : vector<64x128xbf16>, vector<128x128xbf16>, vector<64x128xf32> -> vector<64x128xf32>
    %158 = arith.addf %148, %157 : vector<64x128xf32>
    %c8_135 = arith.constant 8 : index
    %c0_136 = arith.constant 0 : index
    %159 = vector.load %arg11[%c8_135, %c0_136] : memref<82x128xf32, #tpu.memory_space<vmem>>, vector<64x128xf32>
    %c0_137 = arith.constant 0 : index
    %c0_138 = arith.constant 0 : index
    %c0_139 = arith.constant 0 : index
    %160 = vector.load %arg8[%c0_137, %c0_138, %c0_139] : memref<2x64x1xf32, #tpu.memory_space<vmem>>, vector<1x64x1xf32>
    %161 = vector.shape_cast %160 : vector<1x64x1xf32> to vector<64x1xf32>
    %162 = vector.broadcast %161 : vector<64x1xf32> to vector<64x128xf32>
    %163 = arith.mulf %159, %162 : vector<64x128xf32>
    %164 = arith.truncf %163 : vector<64x128xf32> to vector<64x128xbf16>
    %c3_140 = arith.constant 3 : index
    %c0_141 = arith.constant 0 : index
    %c0_142 = arith.constant 0 : index
    %165 = vector.load %arg6[%c3_140, %c0_141, %c0_142] : memref<9x128x128xbf16, #tpu.memory_space<vmem>>, vector<1x128x128xbf16>
    %166 = vector.shape_cast %165 : vector<1x128x128xbf16> to vector<128x128xbf16>
    %cst_143 = arith.constant dense<0.000000e+00> : vector<64x128xf32>
    %167 = tpu.matmul %164, %166, %cst_143 {dimension_numbers = #tpu.dot_dimension_numbers<[1], [0], [0], [1], [0, 0, 1, 1], [], []>} : vector<64x128xbf16>, vector<128x128xbf16>, vector<64x128xf32> -> vector<64x128xf32>
    %168 = arith.addf %158, %167 : vector<64x128xf32>
    %c9_144 = arith.constant 9 : index
    %c0_145 = arith.constant 0 : index
    %169 = vector.load %arg11[%c9_144, %c0_145] : memref<82x128xf32, #tpu.memory_space<vmem>>, vector<64x128xf32>
    %170 = arith.truncf %169 : vector<64x128xf32> to vector<64x128xbf16>
    %c4_146 = arith.constant 4 : index
    %c0_147 = arith.constant 0 : index
    %c0_148 = arith.constant 0 : index
    %171 = vector.load %arg6[%c4_146, %c0_147, %c0_148] : memref<9x128x128xbf16, #tpu.memory_space<vmem>>, vector<1x128x128xbf16>
    %172 = vector.shape_cast %171 : vector<1x128x128xbf16> to vector<128x128xbf16>
    %cst_149 = arith.constant dense<0.000000e+00> : vector<64x128xf32>
    %173 = tpu.matmul %170, %172, %cst_149 {dimension_numbers = #tpu.dot_dimension_numbers<[1], [0], [0], [1], [0, 0, 1, 1], [], []>} : vector<64x128xbf16>, vector<128x128xbf16>, vector<64x128xf32> -> vector<64x128xf32>
    %174 = arith.addf %168, %173 : vector<64x128xf32>
    %c10 = arith.constant 10 : index
    %c0_150 = arith.constant 0 : index
    %175 = vector.load %arg11[%c10, %c0_150] : memref<82x128xf32, #tpu.memory_space<vmem>>, vector<64x128xf32>
    %c1_151 = arith.constant 1 : index
    %c0_152 = arith.constant 0 : index
    %c0_153 = arith.constant 0 : index
    %176 = vector.load %arg8[%c1_151, %c0_152, %c0_153] : memref<2x64x1xf32, #tpu.memory_space<vmem>>, vector<1x64x1xf32>
    %177 = vector.shape_cast %176 : vector<1x64x1xf32> to vector<64x1xf32>
    %178 = vector.broadcast %177 : vector<64x1xf32> to vector<64x128xf32>
    %179 = arith.mulf %175, %178 : vector<64x128xf32>
    %180 = arith.truncf %179 : vector<64x128xf32> to vector<64x128xbf16>
    %c5_154 = arith.constant 5 : index
    %c0_155 = arith.constant 0 : index
    %c0_156 = arith.constant 0 : index
    %181 = vector.load %arg6[%c5_154, %c0_155, %c0_156] : memref<9x128x128xbf16, #tpu.memory_space<vmem>>, vector<1x128x128xbf16>
    %182 = vector.shape_cast %181 : vector<1x128x128xbf16> to vector<128x128xbf16>
    %cst_157 = arith.constant dense<0.000000e+00> : vector<64x128xf32>
    %183 = tpu.matmul %180, %182, %cst_157 {dimension_numbers = #tpu.dot_dimension_numbers<[1], [0], [0], [1], [0, 0, 1, 1], [], []>} : vector<64x128xbf16>, vector<128x128xbf16>, vector<64x128xf32> -> vector<64x128xf32>
    %184 = arith.addf %174, %183 : vector<64x128xf32>
    %c16 = arith.constant 16 : index
    %c0_158 = arith.constant 0 : index
    %185 = vector.load %arg11[%c16, %c0_158] : memref<82x128xf32, #tpu.memory_space<vmem>>, vector<64x128xf32>
    %c0_159 = arith.constant 0 : index
    %c0_160 = arith.constant 0 : index
    %c0_161 = arith.constant 0 : index
    %186 = vector.load %arg8[%c0_159, %c0_160, %c0_161] : memref<2x64x1xf32, #tpu.memory_space<vmem>>, vector<1x64x1xf32>
    %187 = vector.shape_cast %186 : vector<1x64x1xf32> to vector<64x1xf32>
    %188 = vector.broadcast %187 : vector<64x1xf32> to vector<64x128xf32>
    %189 = arith.mulf %185, %188 : vector<64x128xf32>
    %190 = arith.truncf %189 : vector<64x128xf32> to vector<64x128xbf16>
    %c6_162 = arith.constant 6 : index
    %c0_163 = arith.constant 0 : index
    %c0_164 = arith.constant 0 : index
    %191 = vector.load %arg6[%c6_162, %c0_163, %c0_164] : memref<9x128x128xbf16, #tpu.memory_space<vmem>>, vector<1x128x128xbf16>
    %192 = vector.shape_cast %191 : vector<1x128x128xbf16> to vector<128x128xbf16>
    %cst_165 = arith.constant dense<0.000000e+00> : vector<64x128xf32>
    %193 = tpu.matmul %190, %192, %cst_165 {dimension_numbers = #tpu.dot_dimension_numbers<[1], [0], [0], [1], [0, 0, 1, 1], [], []>} : vector<64x128xbf16>, vector<128x128xbf16>, vector<64x128xf32> -> vector<64x128xf32>
    %194 = arith.addf %184, %193 : vector<64x128xf32>
    %c17 = arith.constant 17 : index
    %c0_166 = arith.constant 0 : index
    %195 = vector.load %arg11[%c17, %c0_166] : memref<82x128xf32, #tpu.memory_space<vmem>>, vector<64x128xf32>
    %196 = arith.truncf %195 : vector<64x128xf32> to vector<64x128xbf16>
    %c7_167 = arith.constant 7 : index
    %c0_168 = arith.constant 0 : index
    %c0_169 = arith.constant 0 : index
    %197 = vector.load %arg6[%c7_167, %c0_168, %c0_169] : memref<9x128x128xbf16, #tpu.memory_space<vmem>>, vector<1x128x128xbf16>
    %198 = vector.shape_cast %197 : vector<1x128x128xbf16> to vector<128x128xbf16>
    %cst_170 = arith.constant dense<0.000000e+00> : vector<64x128xf32>
    %199 = tpu.matmul %196, %198, %cst_170 {dimension_numbers = #tpu.dot_dimension_numbers<[1], [0], [0], [1], [0, 0, 1, 1], [], []>} : vector<64x128xbf16>, vector<128x128xbf16>, vector<64x128xf32> -> vector<64x128xf32>
    %200 = arith.addf %194, %199 : vector<64x128xf32>
    %c18 = arith.constant 18 : index
    %c0_171 = arith.constant 0 : index
    %201 = vector.load %arg11[%c18, %c0_171] : memref<82x128xf32, #tpu.memory_space<vmem>>, vector<64x128xf32>
    %c1_172 = arith.constant 1 : index
    %c0_173 = arith.constant 0 : index
    %c0_174 = arith.constant 0 : index
    %202 = vector.load %arg8[%c1_172, %c0_173, %c0_174] : memref<2x64x1xf32, #tpu.memory_space<vmem>>, vector<1x64x1xf32>
    %203 = vector.shape_cast %202 : vector<1x64x1xf32> to vector<64x1xf32>
    %204 = vector.broadcast %203 : vector<64x1xf32> to vector<64x128xf32>
    %205 = arith.mulf %201, %204 : vector<64x128xf32>
    %206 = arith.truncf %205 : vector<64x128xf32> to vector<64x128xbf16>
    %c8_175 = arith.constant 8 : index
    %c0_176 = arith.constant 0 : index
    %c0_177 = arith.constant 0 : index
    %207 = vector.load %arg6[%c8_175, %c0_176, %c0_177] : memref<9x128x128xbf16, #tpu.memory_space<vmem>>, vector<1x128x128xbf16>
    %208 = vector.shape_cast %207 : vector<1x128x128xbf16> to vector<128x128xbf16>
    %cst_178 = arith.constant dense<0.000000e+00> : vector<64x128xf32>
    %209 = tpu.matmul %206, %208, %cst_178 {dimension_numbers = #tpu.dot_dimension_numbers<[1], [0], [0], [1], [0, 0, 1, 1], [], []>} : vector<64x128xbf16>, vector<128x128xbf16>, vector<64x128xf32> -> vector<64x128xf32>
    %210 = arith.addf %200, %209 : vector<64x128xf32>
    %c0_179 = arith.constant 0 : index
    %c9_180 = arith.constant 9 : index
    %c0_181 = arith.constant 0 : index
    %211 = vector.load %arg10[%c0_179, %c9_180, %c0_181] : memref<4x82x4xf32, #tpu.memory_space<vmem>>, vector<1x64x4xf32>
    %212 = vector.shape_cast %211 : vector<1x64x4xf32> to vector<64x4xf32>
    %213 = arith.truncf %212 : vector<64x4xf32> to vector<64x4xbf16>
    %c0_182 = arith.constant 0 : index
    %c0_183 = arith.constant 0 : index
    %214 = vector.load %arg7[%c0_182, %c0_183] : memref<4x128xbf16, #tpu.memory_space<vmem>>, vector<4x128xbf16>
    %cst_184 = arith.constant dense<0.000000e+00> : vector<64x128xf32>
    %215 = tpu.matmul %213, %214, %cst_184 {dimension_numbers = #tpu.dot_dimension_numbers<[1], [0], [0], [1], [0, 0, 1, 1], [], []>} : vector<64x4xbf16>, vector<4x128xbf16>, vector<64x128xf32> -> vector<64x128xf32>
    %216 = arith.addf %210, %215 : vector<64x128xf32>
    %c0_185 = arith.constant 0 : index
    %c0_186 = arith.constant 0 : index
    %c0_187 = arith.constant 0 : index
    %217 = vector.load %arg9[%c0_185, %c0_186, %c0_187] : memref<1x64x128xf32, #tpu.memory_space<vmem>>, vector<1x64x128xf32>
    %218 = vector.shape_cast %217 : vector<1x64x128xf32> to vector<64x128xf32>
    %219 = vector.shape_cast %216 : vector<64x128xf32> to vector<1x64x128xf32>
    tpu.vector_store %arg9[%c0_185, %c0_186, %c0_187], %219 {strides = array<i32>} : memref<1x64x128xf32, #tpu.memory_space<vmem>>, vector<1x64x128xf32>,
    return
  }
  func.func @transform_0(%arg0: i32) -> (i32, i32, i32, i32) {
    %c0_i32 = arith.constant 0 : i32
    %c0_i32_0 = arith.constant 0 : i32
    %c0_i32_1 = arith.constant 0 : i32
    %c0_i32_2 = arith.constant 0 : i32
    return %arg0, %c0_i32, %c0_i32_0, %c0_i32_1 : i32, i32, i32, i32
  }
  func.func @transform_1(%arg0: i32) -> (i32, i32) {
    %c0_i32 = arith.constant 0 : i32
    %c0_i32_0 = arith.constant 0 : i32
    %c0_i32_1 = arith.constant 0 : i32
    return %c0_i32, %c0_i32_0 : i32, i32
  }
  func.func @transform_2(%arg0: i32) -> (i32, i32) {
    %c0_i32 = arith.constant 0 : i32
    %c0_i32_0 = arith.constant 0 : i32
    %c0_i32_1 = arith.constant 0 : i32
    return %c0_i32, %c0_i32_0 : i32, i32
  }
  func.func @transform_3(%arg0: i32) -> (i32, i32, i32) {
    %c0_i32 = arith.constant 0 : i32
    %c0_i32_0 = arith.constant 0 : i32
    %c0_i32_1 = arith.constant 0 : i32
    %c0_i32_2 = arith.constant 0 : i32
    return %c0_i32, %c0_i32_0, %c0_i32_1 : i32, i32, i32
  }
  func.func @transform_4(%arg0: i32) -> (i32, i32) {
    %c0_i32 = arith.constant 0 : i32
    %c0_i32_0 = arith.constant 0 : i32
    %c0_i32_1 = arith.constant 0 : i32
    return %c0_i32, %c0_i32_0 : i32, i32
  }
  func.func @transform_5(%arg0: i32) -> (i32, i32, i32) {
    %c0_i32 = arith.constant 0 : i32
    %c0_i32_0 = arith.constant 0 : i32
    %c0_i32_1 = arith.constant 0 : i32
    %c0_i32_2 = arith.constant 0 : i32
    return %c0_i32, %c0_i32_0, %c0_i32_1 : i32, i32, i32
  }
  func.func @transform_6(%arg0: i32) -> (i32, i32) {
    %c0_i32 = arith.constant 0 : i32
    %c0_i32_0 = arith.constant 0 : i32
    %c0_i32_1 = arith.constant 0 : i32
    return %c0_i32, %c0_i32_0 : i32, i32
  }
  func.func @transform_7(%arg0: i32) -> (i32, i32, i32) {
    %c0_i32 = arith.constant 0 : i32
    %c0_i32_0 = arith.constant 0 : i32
    %c0_i32_1 = arith.constant 0 : i32
    %c0_i32_2 = arith.constant 0 : i32
    return %c0_i32, %c0_i32_0, %c0_i32_1 : i32, i32, i32
  }
  func.func @transform_8(%arg0: i32) -> (i32, i32, i32) {
    %c0_i32 = arith.constant 0 : i32
    %c0_i32_0 = arith.constant 0 : i32
    %c0_i32_1 = arith.constant 0 : i32
    return %arg0, %c0_i32, %c0_i32_0 : i32, i32, i32
  }
}

</mosaic_0001>

<llo_original>
// kernel: downsample_unit_forward.1
$region0: #{downsample_unit_forward.1}
  #allocation0 [shape = 'u32[]', space=smem, size = 0x4, offset = 0x4, fixed_abs, tag = 'smem constant byte address 0x4 - core index']
  #allocation1 [shape = 'u32[72,128]{1,0:T(1,128)}', space=vmem, size = 0x9000, scoped, tag = 'internal scratch']
  #allocation2 [shape = 'f32[4,82,4]{2,1,0:T(8,128)}', space=vmem, size = 0x2c000, scoped, tag = 'scratch operand']
  #allocation3 [shape = 'f32[82,128]{1,0:T(8,128)}', space=vmem, size = 0xb000, scoped, tag = 'scratch operand']
  %s0 = inlined_call_operand.vmem [shape: f32[2,4,64,4], index: 0, kind: input, shape index: {}]
  %s1 = inlined_call_operand.vmem [shape: f32[1,4], index: 1, kind: input, shape index: {}]
  %s2 = inlined_call_operand.vmem [shape: f32[1,4], index: 2, kind: input, shape index: {}]
  %s3 = inlined_call_operand.vmem [shape: bf16[9,4,128], index: 3, kind: input, shape index: {}]
  %s4 = inlined_call_operand.vmem [shape: f32[1,128], index: 4, kind: input, shape index: {}]
  %s5 = inlined_call_operand.vmem [shape: bf16[9,128,128], index: 5, kind: input, shape index: {}]
  %s6 = inlined_call_operand.vmem [shape: bf16[4,128], index: 6, kind: input, shape index: {}]
  %s7 = inlined_call_operand.vmem [shape: f32[2,64,1], index: 7, kind: input, shape index: {}]
  %s8 = inlined_call_operand.vmem [shape: f32[2,64,128], index: 8, kind: output, shape index: {}]
  %s9 = sld [smem:[#allocation0]]
  $region65: #{downsample_unit_forward.1} parent=0
    _
  %s11 = ssub.s32 1, %s9
  %s12 = scalar_select 0, %s11, %s9
  loop: start=0, step=1, limit=4
  $region2: #{downsample_unit_forward.1} parent=0 // loop_pre_header
    _
  $region3: #{downsample_unit_forward.1} parent=0 // loop_header
    %s14 = sphi 0, %s18
    %p15 = scmp.ge.s32.totalorder %s14, 4
    %s24 = sphi 0, %s26
    %s27 = sphi 0, %s24
    %s28 = sphi 0, %s27
    %s44 = sphi 0, %s28
    %s48 = sphi 0, %s48
    %s50 = sphi 0, %s48
    %s51 = sphi 0, %s50
    %s65 = sphi 0, %s51
    %s69 = sphi 0, %s69
    %s71 = sphi 0, %s69
    %s72 = sphi 0, %s71
    %s86 = sphi 0, %s72
    %s90 = sphi 0, %s90
    %s92 = sphi 0, %s90
    %s93 = sphi 0, %s92
    %s107 = sphi 0, %s93
    %s111 = sphi 0, %s111
    %s113 = sphi 0, %s111
    %s114 = sphi 0, %s113
    %s128 = sphi 0, %s114
    %s132 = sphi 0, %s132
    %s134 = sphi 0, %s132
    %s135 = sphi 0, %s134
    %s149 = sphi 0, %s135
    %s153 = sphi 0, %s153
    %s155 = sphi 0, %s153
    %s156 = sphi 0, %s155
    %s170 = sphi 0, %s156
    %s174 = sphi 0, %s174
    %s176 = sphi 0, %s174
    %s177 = sphi 0, %s176
    %s191 = sphi 0, %s177
    %s197 = sphi 0, %s199
    %s200 = sphi 0, %s197
    %s201 = sphi 0, %s200
    %s217 = sphi 0, %s201
  $region4: #{downsample_unit_forward.1} parent=0 // loop_header_branch
    %17 = sbr.rel (%p15) target = $region8
  $region5: #{downsample_unit_forward.1} parent=0 // loop_body
    %s19 = ssub.s32 %s14, 1
    %s20 = ssub.s32 %s14, 2
    %s21 = sadd.s32 %s14, 1
    %s22 = ssub.s32 %s14, %s21
    %p23 = scmp.eq.s32.totalorder %s22, 0
    %s25 = sadd.s32 %s24, 1
    %s26 = scalar_select %p23, %s24, %s25
    %p29 = pneg %p23
    %p30 = scmp.eq.s32.totalorder %s14, 1
    %p31 = por %p29, %p30
    %p32 = scmp.ne.s32.totalorder %s24, %s27
    %p33 = scmp.eq.s32.totalorder %s14, 0
    %p34 = por %p32, %p33
    %p35 = scmp.ne.s32.totalorder %s24, %s27
    %p36 = scmp.eq.s32.totalorder %s19, 1
    %p37 = por %p35, %p36
    %p38 = scmp.ne.s32.totalorder %s27, %s28
    %p39 = scmp.eq.s32.totalorder %s19, 0
    %p40 = por %p38, %p39
    %p41 = scmp.ne.s32.totalorder %s27, %s28
    %p42 = scmp.eq.s32.totalorder %s20, 1
    %p43 = por %p41, %p42
    %p45 = scmp.ne.s32.totalorder %s28, %s44
    %p46 = scmp.eq.s32.totalorder %s20, 0
    %p47 = por %p45, %p46
    %s49 = sadd.s32 %s48, 1
    %p52 = scmp.eq.s32.totalorder %s14, 1
    %p53 = scmp.ne.s32.totalorder %s48, %s50
    %p54 = scmp.eq.s32.totalorder %s14, 0
    %p55 = por %p53, %p54
    %p56 = scmp.ne.s32.totalorder %s48, %s50
    %p57 = scmp.eq.s32.totalorder %s19, 1
    %p58 = por %p56, %p57
    %p59 = scmp.ne.s32.totalorder %s50, %s51
    %p60 = scmp.eq.s32.totalorder %s19, 0
    %p61 = por %p59, %p60
    %p62 = scmp.ne.s32.totalorder %s50, %s51
    %p63 = scmp.eq.s32.totalorder %s20, 1
    %p64 = por %p62, %p63
    %p66 = scmp.ne.s32.totalorder %s51, %s65
    %p67 = scmp.eq.s32.totalorder %s20, 0
    %p68 = por %p66, %p67
    %s70 = sadd.s32 %s69, 1
    %p73 = scmp.eq.s32.totalorder %s14, 1
    %p74 = scmp.ne.s32.totalorder %s69, %s71
    %p75 = scmp.eq.s32.totalorder %s14, 0
    %p76 = por %p74, %p75
    %p77 = scmp.ne.s32.totalorder %s69, %s71
    %p78 = scmp.eq.s32.totalorder %s19, 1
    %p79 = por %p77, %p78
    %p80 = scmp.ne.s32.totalorder %s71, %s72
    %p81 = scmp.eq.s32.totalorder %s19, 0
    %p82 = por %p80, %p81
    %p83 = scmp.ne.s32.totalorder %s71, %s72
    %p84 = scmp.eq.s32.totalorder %s20, 1
    %p85 = por %p83, %p84
    %p87 = scmp.ne.s32.totalorder %s72, %s86
    %p88 = scmp.eq.s32.totalorder %s20, 0
    %p89 = por %p87, %p88
    %s91 = sadd.s32 %s90, 1
    %p94 = scmp.eq.s32.totalorder %s14, 1
    %p95 = scmp.ne.s32.totalorder %s90, %s92
    %p96 = scmp.eq.s32.totalorder %s14, 0
    %p97 = por %p95, %p96
    %p98 = scmp.ne.s32.totalorder %s90, %s92
    %p99 = scmp.eq.s32.totalorder %s19, 1
    %p100 = por %p98, %p99
    %p101 = scmp.ne.s32.totalorder %s92, %s93
    %p102 = scmp.eq.s32.totalorder %s19, 0
    %p103 = por %p101, %p102
    %p104 = scmp.ne.s32.totalorder %s92, %s93
    %p105 = scmp.eq.s32.totalorder %s20, 1
    %p106 = por %p104, %p105
    %p108 = scmp.ne.s32.totalorder %s93, %s107
    %p109 = scmp.eq.s32.totalorder %s20, 0
    %p110 = por %p108, %p109
    %s112 = sadd.s32 %s111, 1
    %p115 = scmp.eq.s32.totalorder %s14, 1
    %p116 = scmp.ne.s32.totalorder %s111, %s113
    %p117 = scmp.eq.s32.totalorder %s14, 0
    %p118 = por %p116, %p117
    %p119 = scmp.ne.s32.totalorder %s111, %s113
    %p120 = scmp.eq.s32.totalorder %s19, 1
    %p121 = por %p119, %p120
    %p122 = scmp.ne.s32.totalorder %s113, %s114
    %p123 = scmp.eq.s32.totalorder %s19, 0
    %p124 = por %p122, %p123
    %p125 = scmp.ne.s32.totalorder %s113, %s114
    %p126 = scmp.eq.s32.totalorder %s20, 1
    %p127 = por %p125, %p126
    %p129 = scmp.ne.s32.totalorder %s114, %s128
    %p130 = scmp.eq.s32.totalorder %s20, 0
    %p131 = por %p129, %p130
    %s133 = sadd.s32 %s132, 1
    %p136 = scmp.eq.s32.totalorder %s14, 1
    %p137 = scmp.ne.s32.totalorder %s132, %s134
    %p138 = scmp.eq.s32.totalorder %s14, 0
    %p139 = por %p137, %p138
    %p140 = scmp.ne.s32.totalorder %s132, %s134
    %p141 = scmp.eq.s32.totalorder %s19, 1
    %p142 = por %p140, %p141
    %p143 = scmp.ne.s32.totalorder %s134, %s135
    %p144 = scmp.eq.s32.totalorder %s19, 0
    %p145 = por %p143, %p144
    %p146 = scmp.ne.s32.totalorder %s134, %s135
    %p147 = scmp.eq.s32.totalorder %s20, 1
    %p148 = por %p146, %p147
    %p150 = scmp.ne.s32.totalorder %s135, %s149
    %p151 = scmp.eq.s32.totalorder %s20, 0
    %p152 = por %p150, %p151
    %s154 = sadd.s32 %s153, 1
    %p157 = scmp.eq.s32.totalorder %s14, 1
    %p158 = scmp.ne.s32.totalorder %s153, %s155
    %p159 = scmp.eq.s32.totalorder %s14, 0
    %p160 = por %p158, %p159
    %p161 = scmp.ne.s32.totalorder %s153, %s155
    %p162 = scmp.eq.s32.totalorder %s19, 1
    %p163 = por %p161, %p162
    %p164 = scmp.ne.s32.totalorder %s155, %s156
    %p165 = scmp.eq.s32.totalorder %s19, 0
    %p166 = por %p164, %p165
    %p167 = scmp.ne.s32.totalorder %s155, %s156
    %p168 = scmp.eq.s32.totalorder %s20, 1
    %p169 = por %p167, %p168
    %p171 = scmp.ne.s32.totalorder %s156, %s170
    %p172 = scmp.eq.s32.totalorder %s20, 0
    %p173 = por %p171, %p172
    %s175 = sadd.s32 %s174, 1
    %p178 = scmp.eq.s32.totalorder %s14, 1
    %p179 = scmp.ne.s32.totalorder %s174, %s176
    %p180 = scmp.eq.s32.totalorder %s14, 0
    %p181 = por %p179, %p180
    %p182 = scmp.ne.s32.totalorder %s174, %s176
    %p183 = scmp.eq.s32.totalorder %s19, 1
    %p184 = por %p182, %p183
    %p185 = scmp.ne.s32.totalorder %s176, %s177
    %p186 = scmp.eq.s32.totalorder %s19, 0
    %p187 = por %p185, %p186
    %p188 = scmp.ne.s32.totalorder %s176, %s177
    %p189 = scmp.eq.s32.totalorder %s20, 1
    %p190 = por %p188, %p189
    %p192 = scmp.ne.s32.totalorder %s177, %s191
    %p193 = scmp.eq.s32.totalorder %s20, 0
    %p194 = por %p192, %p193
    %s195 = ssub.s32 %s14, %s21
    %p196 = scmp.eq.s32.totalorder %s195, 0
    %s198 = sadd.s32 %s197, 1
    %s199 = scalar_select %p196, %s197, %s198
    %p202 = pneg %p196
    %p203 = scmp.eq.s32.totalorder %s14, 1
    %p204 = por %p202, %p203
    %p205 = scmp.ne.s32.totalorder %s197, %s200
    %p206 = scmp.eq.s32.totalorder %s14, 0
    %p207 = por %p205, %p206
    %p208 = scmp.ne.s32.totalorder %s197, %s200
    %p209 = scmp.eq.s32.totalorder %s19, 1
    %p210 = por %p208, %p209
    %p211 = scmp.ne.s32.totalorder %s200, %s201
    %p212 = scmp.eq.s32.totalorder %s19, 0
    %p213 = por %p211, %p212
    %p214 = scmp.ne.s32.totalorder %s200, %s201
    %p215 = scmp.eq.s32.totalorder %s20, 1
    %p216 = por %p214, %p215
    %p218 = scmp.ne.s32.totalorder %s201, %s217
    %p219 = scmp.eq.s32.totalorder %s20, 0
    %p220 = por %p218, %p219
    %p221 = scmp.le.s32.totalorder 1, %s14
    %p222 = scmp.lt.s32.totalorder %s14, 3
    %p223 = pnand %p221, %p222
    %p224 = pneg %p223
    // Predicated region
    $region9: #{downsample_unit_forward.1} parent=5 // pred_check
      _
    $region10: #{downsample_unit_forward.1} parent=5 // pred_check_branch
      %226 = sbr.rel (%p223) target = $region12
    $region11: #{downsample_unit_forward.1} parent=5 // pred_region
      %s227 = ssub.s32 %s14, 1
      // Predicated region
      $region13: #{downsample_unit_forward.1} parent=11 // pred_check
        %p228 = pneg %p61
      $region14: #{downsample_unit_forward.1} parent=11 // pred_check_branch
        %230 = sbr.rel (%p228) target = $region16
      $region15: #{downsample_unit_forward.1} parent=11 // pred_region
        _
      $region16: #{downsample_unit_forward.1} parent=11 // pred_fallthru
        _
      // Predicated region
      $region17: #{downsample_unit_forward.1} parent=11 // pred_check
        %p231 = pneg %p82
      $region18: #{downsample_unit_forward.1} parent=11 // pred_check_branch
        %233 = sbr.rel (%p231) target = $region20
      $region19: #{downsample_unit_forward.1} parent=11 // pred_region
        _
      $region20: #{downsample_unit_forward.1} parent=11 // pred_fallthru
        _
      // Predicated region
      $region21: #{downsample_unit_forward.1} parent=11 // pred_check
        %p234 = pneg %p103
      $region22: #{downsample_unit_forward.1} parent=11 // pred_check_branch
        %236 = sbr.rel (%p234) target = $region24
      $region23: #{downsample_unit_forward.1} parent=11 // pred_region
        _
      $region24: #{downsample_unit_forward.1} parent=11 // pred_fallthru
        _
      // Predicated region
      $region25: #{downsample_unit_forward.1} parent=11 // pred_check
        %p237 = pneg %p124
      $region26: #{downsample_unit_forward.1} parent=11 // pred_check_branch
        %239 = sbr.rel (%p237) target = $region28
      $region27: #{downsample_unit_forward.1} parent=11 // pred_region
        _
      $region28: #{downsample_unit_forward.1} parent=11 // pred_fallthru
        _
      // Predicated region
      $region29: #{downsample_unit_forward.1} parent=11 // pred_check
        %p240 = pneg %p145
      $region30: #{downsample_unit_forward.1} parent=11 // pred_check_branch
        %242 = sbr.rel (%p240) target = $region32
      $region31: #{downsample_unit_forward.1} parent=11 // pred_region
        _
      $region32: #{downsample_unit_forward.1} parent=11 // pred_fallthru
        _
      // Predicated region
      $region33: #{downsample_unit_forward.1} parent=11 // pred_check
        %p243 = pneg %p166
      $region34: #{downsample_unit_forward.1} parent=11 // pred_check_branch
        %245 = sbr.rel (%p243) target = $region36
      $region35: #{downsample_unit_forward.1} parent=11 // pred_region
        _
      $region36: #{downsample_unit_forward.1} parent=11 // pred_fallthru
        _
      // Predicated region
      $region37: #{downsample_unit_forward.1} parent=11 // pred_check
        %p246 = pneg %p187
      $region38: #{downsample_unit_forward.1} parent=11 // pred_check_branch
        %248 = sbr.rel (%p246) target = $region40
      $region39: #{downsample_unit_forward.1} parent=11 // pred_region
        _
      $region40: #{downsample_unit_forward.1} parent=11 // pred_fallthru
        _
    $region12: #{downsample_unit_forward.1} parent=5 // pred_fallthru
      _
    %p249 = scmp.lt.s32.totalorder %s14, 2
    // Predicated region
    $region41: #{downsample_unit_forward.1} parent=5 // pred_check
      %p250 = pneg %p249
    $region42: #{downsample_unit_forward.1} parent=5 // pred_check_branch
      %252 = sbr.rel (%p250) target = $region44
    $region43: #{downsample_unit_forward.1} parent=5 // pred_region
      // Predicated region
      $region45: #{downsample_unit_forward.1} parent=43 // pred_check
        %p253 = pneg %p34
      $region46: #{downsample_unit_forward.1} parent=43 // pred_check_branch
        %255 = sbr.rel (%p253) target = $region48
      $region47: #{downsample_unit_forward.1} parent=43 // pred_region
        %p256 = scmp.lt.s32.totalorder %s14, 1
        %s257 = scalar_select %p256, %s14, 1
        %s258 = smul.addr %s257, 32
        %s259 = smul.addr %s258, 8
        %s260 = scalar_lea.vmem %s0, %s259
      $region48: #{downsample_unit_forward.1} parent=43 // pred_fallthru
        _
    $region44: #{downsample_unit_forward.1} parent=5 // pred_fallthru
      _
    %p261 = scmp.le.s32.totalorder 1, %s14
    %p262 = scmp.lt.s32.totalorder %s14, 3
    %p263 = pnand %p261, %p262
    %p264 = pneg %p263
    // Predicated region
    $region49: #{downsample_unit_forward.1} parent=5 // pred_check
      _
    $region50: #{downsample_unit_forward.1} parent=5 // pred_check_branch
      %266 = sbr.rel (%p263) target = $region52
    $region51: #{downsample_unit_forward.1} parent=5 // pred_region
      %s267 = ssub.s32 %s14, 1
      %p268 = scmp.lt.s32.totalorder %s19, 1
      %s269 = scalar_select %p268, %s19, 1
      %s270 = smul.addr %s269, 32
      %s271 = smul.addr %s270, 8
      %s272 = scalar_lea.vmem %s0, %s271
      %p273 = pneg %p40
      %p274 = pneg %p37
      %p275 = pneg %p61
      %p276 = pneg %p58
      %p277 = pneg %p82
      %p278 = pneg %p79
      %p279 = pneg %p103
      %p280 = pneg %p100
      %p281 = pneg %p124
      %p282 = pneg %p121
      %p283 = pneg %p145
      %p284 = pneg %p142
      %p285 = pneg %p166
      %p286 = pneg %p163
      %p287 = pneg %p187
      %p288 = pneg %p184
      %p289 = pneg %p213
      %p290 = pneg %p210
      %p291 = scmp.lt.s32.totalorder %s19, 1
      %s292 = scalar_select %p291, %s19, 1
      %s293 = smul.addr %s292, 8
      %s294 = smul.addr %s293, 8
      %s295 = scalar_lea.vmem %s8, %s294
      %p296 = scmp.lt.s32.totalorder %s19, 1
      %s297 = scalar_select %p296, %s19, 1
      %s298 = smul.addr %s297, 32
      %s299 = smul.addr %s298, 8
      %s300 = scalar_lea.vmem %s0, %s299
      %p301 = scmp.lt.s32.totalorder %s19, 1
      %s302 = scalar_select %p301, %s19, 1
      %s303 = smul.addr %s302, 8
      %s304 = smul.addr %s303, 8
      %s305 = scalar_lea.vmem %s8, %s304
      %vm307 = vcmask 31744
      %308 = vst.msk [vmem:[#allocation2] sm:$0xff] %vm307, 0.0
      %309 = vst.msk [vmem:[#allocation2 + $0x8] sm:$0xff] %vm307, 0.0
      %310 = vst.msk [vmem:[#allocation2 + $0x10] sm:$0xff] %vm307, 0.0
      %311 = vst.msk [vmem:[#allocation2 + $0x18] sm:$0xff] %vm307, 0.0
      %312 = vst.msk [vmem:[#allocation2 + $0x20] sm:$0xff] %vm307, 0.0
      %313 = vst.msk [vmem:[#allocation2 + $0x28] sm:$0xff] %vm307, 0.0
      %314 = vst.msk [vmem:[#allocation2 + $0x30] sm:$0xff] %vm307, 0.0
      %315 = vst.msk [vmem:[#allocation2 + $0x38] sm:$0xff] %vm307, 0.0
      %316 = vst.msk [vmem:[#allocation2 + $0x40] sm:$0xff] %vm307, 0.0
      %317 = vst.msk [vmem:[#allocation2 + $0x48] sm:$0xff] %vm307, 0.0
      %vm318 = vcmask 25600
      %319 = vst.msk [vmem:[#allocation2 + $0x50] sm:$0x3] %vm318, 0.0
      %320 = vst.msk [vmem:[#allocation2 + $0x58] sm:$0xff] %vm307, 0.0
      %321 = vst.msk [vmem:[#allocation2 + $0x60] sm:$0xff] %vm307, 0.0
      %322 = vst.msk [vmem:[#allocation2 + $0x68] sm:$0xff] %vm307, 0.0
      %323 = vst.msk [vmem:[#allocation2 + $0x70] sm:$0xff] %vm307, 0.0
      %324 = vst.msk [vmem:[#allocation2 + $0x78] sm:$0xff] %vm307, 0.0
      %325 = vst.msk [vmem:[#allocation2 + $0x80] sm:$0xff] %vm307, 0.0
      %326 = vst.msk [vmem:[#allocation2 + $0x88] sm:$0xff] %vm307, 0.0
      %327 = vst.msk [vmem:[#allocation2 + $0x90] sm:$0xff] %vm307, 0.0
      %328 = vst.msk [vmem:[#allocation2 + $0x98] sm:$0xff] %vm307, 0.0
      %329 = vst.msk [vmem:[#allocation2 + $0xa0] sm:$0xff] %vm307, 0.0
      %330 = vst.msk [vmem:[#allocation2 + $0xa8] sm:$0x3] %vm318, 0.0
      %331 = vst.msk [vmem:[#allocation2 + $0xb0] sm:$0xff] %vm307, 0.0
      %332 = vst.msk [vmem:[#allocation2 + $0xb8] sm:$0xff] %vm307, 0.0
      %333 = vst.msk [vmem:[#allocation2 + $0xc0] sm:$0xff] %vm307, 0.0
      %334 = vst.msk [vmem:[#allocation2 + $0xc8] sm:$0xff] %vm307, 0.0
      %335 = vst.msk [vmem:[#allocation2 + $0xd0] sm:$0xff] %vm307, 0.0
      %336 = vst.msk [vmem:[#allocation2 + $0xd8] sm:$0xff] %vm307, 0.0
      %337 = vst.msk [vmem:[#allocation2 + $0xe0] sm:$0xff] %vm307, 0.0
      %338 = vst.msk [vmem:[#allocation2 + $0xe8] sm:$0xff] %vm307, 0.0
      %339 = vst.msk [vmem:[#allocation2 + $0xf0] sm:$0xff] %vm307, 0.0
      %340 = vst.msk [vmem:[#allocation2 + $0xf8] sm:$0xff] %vm307, 0.0
      %341 = vst.msk [vmem:[#allocation2 + $0x100] sm:$0x3] %vm318, 0.0
      %342 = vst.msk [vmem:[#allocation2 + $0x108] sm:$0xff] %vm307, 0.0
      %343 = vst.msk [vmem:[#allocation2 + $0x110] sm:$0xff] %vm307, 0.0
      %344 = vst.msk [vmem:[#allocation2 + $0x118] sm:$0xff] %vm307, 0.0
      %345 = vst.msk [vmem:[#allocation2 + $0x120] sm:$0xff] %vm307, 0.0
      %346 = vst.msk [vmem:[#allocation2 + $0x128] sm:$0xff] %vm307, 0.0
      %347 = vst.msk [vmem:[#allocation2 + $0x130] sm:$0xff] %vm307, 0.0
      %348 = vst.msk [vmem:[#allocation2 + $0x138] sm:$0xff] %vm307, 0.0
      %349 = vst.msk [vmem:[#allocation2 + $0x140] sm:$0xff] %vm307, 0.0
      %350 = vst.msk [vmem:[#allocation2 + $0x148] sm:$0xff] %vm307, 0.0
      %351 = vst.msk [vmem:[#allocation2 + $0x150] sm:$0xff] %vm307, 0.0
      %352 = vst.msk [vmem:[#allocation2 + $0x158] sm:$0x3] %vm318, 0.0
      %v353 = vld [vmem:[%s1] sm:$0x1]
      %v354 = vld [vmem:[%s2] sm:$0x1]
      %v355 = vld [vmem:[%s300] sm:$0xff]
      %v356 = vld [vmem:[%s300 + $0x8] sm:$0xff]
      %v357 = vld [vmem:[%s300 + $0x10] sm:$0xff]
      %v358 = vld [vmem:[%s300 + $0x18] sm:$0xff]
      %v359 = vld [vmem:[%s300 + $0x20] sm:$0xff]
      %v360 = vld [vmem:[%s300 + $0x28] sm:$0xff]
      %v361 = vld [vmem:[%s300 + $0x30] sm:$0xff]
      %v362 = vld [vmem:[%s300 + $0x38] sm:$0xff]
      %v364 = vperm.slane %v353, 0
      %v366 = vmul.f32 %v355, %v364
      %v367 = vmul.f32 %v356, %v364
      %v368 = vmul.f32 %v357, %v364
      %v369 = vmul.f32 %v358, %v364
      %v370 = vmul.f32 %v359, %v364
      %v371 = vmul.f32 %v360, %v364
      %v372 = vmul.f32 %v361, %v364
      %v373 = vmul.f32 %v362, %v364
      %v375 = vperm.slane %v354, 0
      %v377 = vadd.f32 %v366, %v375
      %v378 = vadd.f32 %v367, %v375
      %v379 = vadd.f32 %v368, %v375
      %v380 = vadd.f32 %v369, %v375
      %v381 = vadd.f32 %v370, %v375
      %v382 = vadd.f32 %v371, %v375
      %v383 = vadd.f32 %v372, %v375
      %v384 = vadd.f32 %v373, %v375
      %v385 = vmax.f32 %v377, 0.0
      %v386 = vmax.f32 %v378, 0.0
      %v387 = vmax.f32 %v379, 0.0
      %v388 = vmax.f32 %v380, 0.0
      %v389 = vmax.f32 %v381, 0.0
      %v390 = vmax.f32 %v382, 0.0
      %v391 = vmax.f32 %v383, 0.0
      %v392 = vmax.f32 %v384, 0.0
      %393 = vst.msk [vmem:[#allocation2 + $0x9] sm:$0xff] %vm307, %v385
      %394 = vst.msk [vmem:[#allocation2 + $0x11] sm:$0xff] %vm307, %v386
      %395 = vst.msk [vmem:[#allocation2 + $0x19] sm:$0xff] %vm307, %v387
      %396 = vst.msk [vmem:[#allocation2 + $0x21] sm:$0xff] %vm307, %v388
      %397 = vst.msk [vmem:[#allocation2 + $0x29] sm:$0xff] %vm307, %v389
      %398 = vst.msk [vmem:[#allocation2 + $0x31] sm:$0xff] %vm307, %v390
      %399 = vst.msk [vmem:[#allocation2 + $0x39] sm:$0xff] %vm307, %v391
      %400 = vst.msk [vmem:[#allocation2 + $0x41] sm:$0xff] %vm307, %v392
      %s401 = scalar_lea.vmem %s300, 64
      %v402 = vld [vmem:[%s401] sm:$0xff]
      %v403 = vld [vmem:[%s401 + $0x8] sm:$0xff]
      %v404 = vld [vmem:[%s401 + $0x10] sm:$0xff]
      %v405 = vld [vmem:[%s401 + $0x18] sm:$0xff]
      %v406 = vld [vmem:[%s401 + $0x20] sm:$0xff]
      %v407 = vld [vmem:[%s401 + $0x28] sm:$0xff]
      %v408 = vld [vmem:[%s401 + $0x30] sm:$0xff]
      %v409 = vld [vmem:[%s401 + $0x38] sm:$0xff]
      %v410 = vmul.f32 %v402, %v364
      %v411 = vmul.f32 %v403, %v364
      %v412 = vmul.f32 %v404, %v364
      %v413 = vmul.f32 %v405, %v364
      %v414 = vmul.f32 %v406, %v364
      %v415 = vmul.f32 %v407, %v364
      %v416 = vmul.f32 %v408, %v364
      %v417 = vmul.f32 %v409, %v364
      %v418 = vadd.f32 %v410, %v375
      %v419 = vadd.f32 %v411, %v375
      %v420 = vadd.f32 %v412, %v375
      %v421 = vadd.f32 %v413, %v375
      %v422 = vadd.f32 %v414, %v375
      %v423 = vadd.f32 %v415, %v375
      %v424 = vadd.f32 %v416, %v375
      %v425 = vadd.f32 %v417, %v375
      %v426 = vmax.f32 %v418, 0.0
      %v427 = vmax.f32 %v419, 0.0
      %v428 = vmax.f32 %v420, 0.0
      %v429 = vmax.f32 %v421, 0.0
      %v430 = vmax.f32 %v422, 0.0
      %v431 = vmax.f32 %v423, 0.0
      %v432 = vmax.f32 %v424, 0.0
      %v433 = vmax.f32 %v425, 0.0
      %s434 = scalar_lea.vmem [#allocation2], 88
      %435 = vst.msk [vmem:[%s434 + $0x9] sm:$0xff] %vm307, %v426
      %436 = vst.msk [vmem:[%s434 + $0x11] sm:$0xff] %vm307, %v427
      %437 = vst.msk [vmem:[%s434 + $0x19] sm:$0xff] %vm307, %v428
      %438 = vst.msk [vmem:[%s434 + $0x21] sm:$0xff] %vm307, %v429
      %439 = vst.msk [vmem:[%s434 + $0x29] sm:$0xff] %vm307, %v430
      %440 = vst.msk [vmem:[%s434 + $0x31] sm:$0xff] %vm307, %v431
      %441 = vst.msk [vmem:[%s434 + $0x39] sm:$0xff] %vm307, %v432
      %442 = vst.msk [vmem:[%s434 + $0x41] sm:$0xff] %vm307, %v433
      %s443 = scalar_lea.vmem %s300, 128
      %v444 = vld [vmem:[%s443] sm:$0xff]
      %v445 = vld [vmem:[%s443 + $0x8] sm:$0xff]
      %v446 = vld [vmem:[%s443 + $0x10] sm:$0xff]
      %v447 = vld [vmem:[%s443 + $0x18] sm:$0xff]
      %v448 = vld [vmem:[%s443 + $0x20] sm:$0xff]
      %v449 = vld [vmem:[%s443 + $0x28] sm:$0xff]
      %v450 = vld [vmem:[%s443 + $0x30] sm:$0xff]
      %v451 = vld [vmem:[%s443 + $0x38] sm:$0xff]
      %v452 = vmul.f32 %v444, %v364
      %v453 = vmul.f32 %v445, %v364
      %v454 = vmul.f32 %v446, %v364
      %v455 = vmul.f32 %v447, %v364
      %v456 = vmul.f32 %v448, %v364
      %v457 = vmul.f32 %v449, %v364
      %v458 = vmul.f32 %v450, %v364
      %v459 = vmul.f32 %v451, %v364
      %v460 = vadd.f32 %v452, %v375
      %v461 = vadd.f32 %v453, %v375
      %v462 = vadd.f32 %v454, %v375
      %v463 = vadd.f32 %v455, %v375
      %v464 = vadd.f32 %v456, %v375
      %v465 = vadd.f32 %v457, %v375
      %v466 = vadd.f32 %v458, %v375
      %v467 = vadd.f32 %v459, %v375
      %v468 = vmax.f32 %v460, 0.0
      %v469 = vmax.f32 %v461, 0.0
      %v470 = vmax.f32 %v462, 0.0
      %v471 = vmax.f32 %v463, 0.0
      %v472 = vmax.f32 %v464, 0.0
      %v473 = vmax.f32 %v465, 0.0
      %v474 = vmax.f32 %v466, 0.0
      %v475 = vmax.f32 %v467, 0.0
      %s476 = scalar_lea.vmem [#allocation2], 176
      %477 = vst.msk [vmem:[%s476 + $0x9] sm:$0xff] %vm307, %v468
      %478 = vst.msk [vmem:[%s476 + $0x11] sm:$0xff] %vm307, %v469
      %479 = vst.msk [vmem:[%s476 + $0x19] sm:$0xff] %vm307, %v470
      %480 = vst.msk [vmem:[%s476 + $0x21] sm:$0xff] %vm307, %v471
      %481 = vst.msk [vmem:[%s476 + $0x29] sm:$0xff] %vm307, %v472
      %482 = vst.msk [vmem:[%s476 + $0x31] sm:$0xff] %vm307, %v473
      %483 = vst.msk [vmem:[%s476 + $0x39] sm:$0xff] %vm307, %v474
      %484 = vst.msk [vmem:[%s476 + $0x41] sm:$0xff] %vm307, %v475
      %s485 = scalar_lea.vmem %s300, 192
      %v486 = vld [vmem:[%s485] sm:$0xff]
      %v487 = vld [vmem:[%s485 + $0x8] sm:$0xff]
      %v488 = vld [vmem:[%s485 + $0x10] sm:$0xff]
      %v489 = vld [vmem:[%s485 + $0x18] sm:$0xff]
      %v490 = vld [vmem:[%s485 + $0x20] sm:$0xff]
      %v491 = vld [vmem:[%s485 + $0x28] sm:$0xff]
      %v492 = vld [vmem:[%s485 + $0x30] sm:$0xff]
      %v493 = vld [vmem:[%s485 + $0x38] sm:$0xff]
      %v494 = vmul.f32 %v486, %v364
      %v495 = vmul.f32 %v487, %v364
      %v496 = vmul.f32 %v488, %v364
      %v497 = vmul.f32 %v489, %v364
      %v498 = vmul.f32 %v490, %v364
      %v499 = vmul.f32 %v491, %v364
      %v500 = vmul.f32 %v492, %v364
      %v501 = vmul.f32 %v493, %v364
      %v502 = vadd.f32 %v494, %v375
      %v503 = vadd.f32 %v495, %v375
      %v504 = vadd.f32 %v496, %v375
      %v505 = vadd.f32 %v497, %v375
      %v506 = vadd.f32 %v498, %v375
      %v507 = vadd.f32 %v499, %v375
      %v508 = vadd.f32 %v500, %v375
      %v509 = vadd.f32 %v501, %v375
      %v510 = vmax.f32 %v502, 0.0
      %v511 = vmax.f32 %v503, 0.0
      %v512 = vmax.f32 %v504, 0.0
      %v513 = vmax.f32 %v505, 0.0
      %v514 = vmax.f32 %v506, 0.0
      %v515 = vmax.f32 %v507, 0.0
      %v516 = vmax.f32 %v508, 0.0
      %v517 = vmax.f32 %v509, 0.0
      %s518 = scalar_lea.vmem [#allocation2], 264
      %519 = vst.msk [vmem:[%s518 + $0x9] sm:$0xff] %vm307, %v510
      %520 = vst.msk [vmem:[%s518 + $0x11] sm:$0xff] %vm307, %v511
      %521 = vst.msk [vmem:[%s518 + $0x19] sm:$0xff] %vm307, %v512
      %522 = vst.msk [vmem:[%s518 + $0x21] sm:$0xff] %vm307, %v513
      %523 = vst.msk [vmem:[%s518 + $0x29] sm:$0xff] %vm307, %v514
      %524 = vst.msk [vmem:[%s518 + $0x31] sm:$0xff] %vm307, %v515
      %525 = vst.msk [vmem:[%s518 + $0x39] sm:$0xff] %vm307, %v516
      %526 = vst.msk [vmem:[%s518 + $0x41] sm:$0xff] %vm307, %v517
      %v527 = vld [vmem:[%s518] sm:$0xff]
      %v528 = vld [vmem:[%s518 + $0x8] sm:$0xff]
      %v529 = vld [vmem:[%s518 + $0x10] sm:$0xff]
      %v530 = vld [vmem:[%s518 + $0x18] sm:$0xff]
      %v531 = vld [vmem:[%s518 + $0x20] sm:$0xff]
      %v532 = vld [vmem:[%s518 + $0x28] sm:$0xff]
      %v533 = vld [vmem:[%s518 + $0x30] sm:$0xff]
      %v534 = vld [vmem:[%s518 + $0x38] sm:$0xff]
      %v535 = vld [vmem:[%s7] sm:$0xff]
      %v536 = vld [vmem:[%s7 + $0x8] sm:$0xff]
      %v537 = vld [vmem:[%s7 + $0x10] sm:$0xff]
      %v538 = vld [vmem:[%s7 + $0x18] sm:$0xff]
      %v539 = vld [vmem:[%s7 + $0x20] sm:$0xff]
      %v540 = vld [vmem:[%s7 + $0x28] sm:$0xff]
      %v541 = vld [vmem:[%s7 + $0x30] sm:$0xff]
      %v542 = vld [vmem:[%s7 + $0x38] sm:$0xff]
      %544 = vset.pattern.permute.xlu0 0
      %545 = vperm.xlu0 %544, %v535
      %v546 = vpop.permute.xlu0 %545
      %549 = vset.pattern.permute.xlu0 0
      %550 = vperm.xlu0 %549, %v536
      %v551 = vpop.permute.xlu0 %550
      %554 = vset.pattern.permute.xlu0 0
      %555 = vperm.xlu0 %554, %v537
      %v556 = vpop.permute.xlu0 %555
      %559 = vset.pattern.permute.xlu0 0
      %560 = vperm.xlu0 %559, %v538
      %v561 = vpop.permute.xlu0 %560
      %564 = vset.pattern.permute.xlu0 0
      %565 = vperm.xlu0 %564, %v539
      %v566 = vpop.permute.xlu0 %565
      %569 = vset.pattern.permute.xlu0 0
      %570 = vperm.xlu0 %569, %v540
      %v571 = vpop.permute.xlu0 %570
      %574 = vset.pattern.permute.xlu0 0
      %575 = vperm.xlu0 %574, %v541
      %v576 = vpop.permute.xlu0 %575
      %579 = vset.pattern.permute.xlu0 0
      %580 = vperm.xlu0 %579, %v542
      %v581 = vpop.permute.xlu0 %580
      %v583 = vmul.f32 %v527, %v546
      %v584 = vmul.f32 %v528, %v551
      %v585 = vmul.f32 %v529, %v556
      %v586 = vmul.f32 %v530, %v561
      %v587 = vmul.f32 %v531, %v566
      %v588 = vmul.f32 %v532, %v571
      %v589 = vmul.f32 %v533, %v576
      %v590 = vmul.f32 %v534, %v581
      %v591 = vpack.c.bf16 %v584, %v583
      %v592 = vpack.c.bf16 %v586, %v585
      %v593 = vpack.c.bf16 %v588, %v587
      %v594 = vpack.c.bf16 %v590, %v589
      %v595 = vld [vmem:[%s3] sm:$0x3]
      %v596 = vld [vmem:[%s476 + $0x1] sm:$0xff]
      %v597 = vld [vmem:[%s476 + $0x9] sm:$0xff]
      %v598 = vld [vmem:[%s476 + $0x11] sm:$0xff]
      %v599 = vld [vmem:[%s476 + $0x19] sm:$0xff]
      %v600 = vld [vmem:[%s476 + $0x21] sm:$0xff]
      %v601 = vld [vmem:[%s476 + $0x29] sm:$0xff]
      %v602 = vld [vmem:[%s476 + $0x31] sm:$0xff]
      %v603 = vld [vmem:[%s476 + $0x39] sm:$0xff]
      %v604 = vpack.c.bf16 %v597, %v596
      %v605 = vpack.c.bf16 %v599, %v598
      %v606 = vpack.c.bf16 %v601, %v600
      %v607 = vpack.c.bf16 %v603, %v602
      %s608 = scalar_lea.vmem %s3, 2
      %v609 = vld [vmem:[%s608] sm:$0x3]
      %v611 = vsel %vm307, %v604, 0
      %v614 = vsel %vm307, %v605, 0
      %v617 = vsel %vm307, %v606, 0
      %v620 = vsel %vm307, %v607, 0
      %vm622 = vcmask 1041408
      %v624 = vsel %vm622, %v609, 0
      %626 = vmatpush.bf16.msra.mxu0 0
      %627 = vmatpush.bf16.msra.mxu0 0
      %628 = vmatpush.bf16.msra.mxu0 0
      %629 = vmatpush.bf16.msra.mxu0 0
      %630 = vmatpush.bf16.msra.mxu0 0
      %631 = vmatpush.bf16.msra.mxu0 0
      %632 = vmatpush.bf16.msra.mxu0 0
      %633 = vmatpush.bf16.msra.mxu0 %v624
      %634 = vmatmul.bf16.gmra.mxu0 %v611
      %v635 = vpop.f32.mrf.mxu0
      %v636 = vadd.f32 0.0, %v635
      %v637 = vpop.f32.mrf.mxu0
      %v638 = vadd.f32 0.0, %v637
      %639 = vmatmul.bf16.gmra.mxu0 %v614
      %v640 = vpop.f32.mrf.mxu0
      %v641 = vadd.f32 0.0, %v640
      %v642 = vpop.f32.mrf.mxu0
      %v643 = vadd.f32 0.0, %v642
      %644 = vmatmul.bf16.gmra.mxu0 %v617
      %v645 = vpop.f32.mrf.mxu0
      %v646 = vadd.f32 0.0, %v645
      %v647 = vpop.f32.mrf.mxu0
      %v648 = vadd.f32 0.0, %v647
      %649 = vmatmul.bf16.gmra.mxu0 %v620
      %v650 = vpop.f32.mrf.mxu0
      %v651 = vadd.f32 0.0, %v650
      %v652 = vpop.f32.mrf.mxu0
      %v653 = vadd.f32 0.0, %v652
      %654 = vdwg.mxu0
      %v656 = vsel %vm307, %v591, 0
      %v659 = vsel %vm307, %v592, 0
      %v662 = vsel %vm307, %v593, 0
      %v665 = vsel %vm307, %v594, 0
      %v668 = vsel %vm622, %v595, 0
      %670 = vmatpush.bf16.msra.mxu0 0
      %671 = vmatpush.bf16.msra.mxu0 0
      %672 = vmatpush.bf16.msra.mxu0 0
      %673 = vmatpush.bf16.msra.mxu0 0
      %674 = vmatpush.bf16.msra.mxu0 0
      %675 = vmatpush.bf16.msra.mxu0 0
      %676 = vmatpush.bf16.msra.mxu0 0
      %677 = vmatpush.bf16.msra.mxu0 %v668
      %678 = vmatmul.bf16.gmra.mxu0 %v656
      %v679 = vpop.f32.mrf.mxu0
      %v680 = vadd.f32 %v636, %v679
      %v681 = vpop.f32.mrf.mxu0
      %v682 = vadd.f32 %v638, %v681
      %683 = vmatmul.bf16.gmra.mxu0 %v659
      %v684 = vpop.f32.mrf.mxu0
      %v685 = vadd.f32 %v641, %v684
      %v686 = vpop.f32.mrf.mxu0
      %v687 = vadd.f32 %v643, %v686
      %688 = vmatmul.bf16.gmra.mxu0 %v662
      %v689 = vpop.f32.mrf.mxu0
      %v690 = vadd.f32 %v646, %v689
      %v691 = vpop.f32.mrf.mxu0
      %v692 = vadd.f32 %v648, %v691
      %693 = vmatmul.bf16.gmra.mxu0 %v665
      %v694 = vpop.f32.mrf.mxu0
      %v695 = vadd.f32 %v651, %v694
      %v696 = vpop.f32.mrf.mxu0
      %v697 = vadd.f32 %v653, %v696
      %698 = vdwg.mxu0
      %v699 = vld [vmem:[%s518 + $0x1] sm:$0xff]
      %v700 = vld [vmem:[%s518 + $0x9] sm:$0xff]
      %v701 = vld [vmem:[%s518 + $0x11] sm:$0xff]
      %v702 = vld [vmem:[%s518 + $0x19] sm:$0xff]
      %v703 = vld [vmem:[%s518 + $0x21] sm:$0xff]
      %v704 = vld [vmem:[%s518 + $0x29] sm:$0xff]
      %v705 = vld [vmem:[%s518 + $0x31] sm:$0xff]
      %v706 = vld [vmem:[%s518 + $0x39] sm:$0xff]
      %v707 = vpack.c.bf16 %v700, %v699
      %v708 = vpack.c.bf16 %v702, %v701
      %v709 = vpack.c.bf16 %v704, %v703
      %v710 = vpack.c.bf16 %v706, %v705
      %s711 = scalar_lea.vmem %s3, 4
      %v712 = vld [vmem:[%s711] sm:$0x3]
      %v714 = vsel %vm307, %v707, 0
      %v717 = vsel %vm307, %v708, 0
      %v720 = vsel %vm307, %v709, 0
      %v723 = vsel %vm307, %v710, 0
      %v726 = vsel %vm622, %v712, 0
      %728 = vmatpush.bf16.msra.mxu0 0
      %729 = vmatpush.bf16.msra.mxu0 0
      %730 = vmatpush.bf16.msra.mxu0 0
      %731 = vmatpush.bf16.msra.mxu0 0
      %732 = vmatpush.bf16.msra.mxu0 0
      %733 = vmatpush.bf16.msra.mxu0 0
      %734 = vmatpush.bf16.msra.mxu0 0
      %735 = vmatpush.bf16.msra.mxu0 %v726
      %736 = vmatmul.bf16.gmra.mxu0 %v714
      %v737 = vpop.f32.mrf.mxu0
      %v738 = vadd.f32 0.0, %v737
      %v739 = vpop.f32.mrf.mxu0
      %v740 = vadd.f32 0.0, %v739
      %741 = vmatmul.bf16.gmra.mxu0 %v717
      %v742 = vpop.f32.mrf.mxu0
      %v743 = vadd.f32 0.0, %v742
      %v744 = vpop.f32.mrf.mxu0
      %v745 = vadd.f32 0.0, %v744
      %746 = vmatmul.bf16.gmra.mxu0 %v720
      %v747 = vpop.f32.mrf.mxu0
      %v748 = vadd.f32 0.0, %v747
      %v749 = vpop.f32.mrf.mxu0
      %v750 = vadd.f32 0.0, %v749
      %751 = vmatmul.bf16.gmra.mxu0 %v723
      %v752 = vpop.f32.mrf.mxu0
      %v753 = vadd.f32 0.0, %v752
      %v754 = vpop.f32.mrf.mxu0
      %v755 = vadd.f32 0.0, %v754
      %756 = vdwg.mxu0
      %v757 = vadd.f32 %v680, %v738
      %v758 = vadd.f32 %v682, %v740
      %v759 = vadd.f32 %v685, %v743
      %v760 = vadd.f32 %v687, %v745
      %v761 = vadd.f32 %v690, %v748
      %v762 = vadd.f32 %v692, %v750
      %v763 = vadd.f32 %v695, %v753
      %v764 = vadd.f32 %v697, %v755
      %v765 = vld [vmem:[%s434 + $0x8] sm:$0xff]
      %v766 = vld [vmem:[%s434 + $0x10] sm:$0xff]
      %v767 = vld [vmem:[%s434 + $0x18] sm:$0xff]
      %v768 = vld [vmem:[%s434 + $0x20] sm:$0xff]
      %v769 = vld [vmem:[%s434 + $0x28] sm:$0xff]
      %v770 = vld [vmem:[%s434 + $0x30] sm:$0xff]
      %v771 = vld [vmem:[%s434 + $0x38] sm:$0xff]
      %v772 = vld [vmem:[%s434 + $0x40] sm:$0xff]
      %v773 = vmul.f32 %v765, %v546
      %v774 = vmul.f32 %v766, %v551
      %v775 = vmul.f32 %v767, %v556
      %v776 = vmul.f32 %v768, %v561
      %v777 = vmul.f32 %v769, %v566
      %v778 = vmul.f32 %v770, %v571
      %v779 = vmul.f32 %v771, %v576
      %v780 = vmul.f32 %v772, %v581
      %v781 = vpack.c.bf16 %v774, %v773
      %v782 = vpack.c.bf16 %v776, %v775
      %v783 = vpack.c.bf16 %v778, %v777
      %v784 = vpack.c.bf16 %v780, %v779
      %s785 = scalar_lea.vmem %s3, 6
      %v786 = vld [vmem:[%s785] sm:$0x3]
      %v788 = vsel %vm307, %v781, 0
      %v791 = vsel %vm307, %v782, 0
      %v794 = vsel %vm307, %v783, 0
      %v797 = vsel %vm307, %v784, 0
      %v800 = vsel %vm622, %v786, 0
      %802 = vmatpush.bf16.msra.mxu0 0
      %803 = vmatpush.bf16.msra.mxu0 0
      %804 = vmatpush.bf16.msra.mxu0 0
      %805 = vmatpush.bf16.msra.mxu0 0
      %806 = vmatpush.bf16.msra.mxu0 0
      %807 = vmatpush.bf16.msra.mxu0 0
      %808 = vmatpush.bf16.msra.mxu0 0
      %809 = vmatpush.bf16.msra.mxu0 %v800
      %810 = vmatmul.bf16.gmra.mxu0 %v788
      %v811 = vpop.f32.mrf.mxu0
      %v812 = vadd.f32 0.0, %v811
      %v813 = vpop.f32.mrf.mxu0
      %v814 = vadd.f32 0.0, %v813
      %815 = vmatmul.bf16.gmra.mxu0 %v791
      %v816 = vpop.f32.mrf.mxu0
      %v817 = vadd.f32 0.0, %v816
      %v818 = vpop.f32.mrf.mxu0
      %v819 = vadd.f32 0.0, %v818
      %820 = vmatmul.bf16.gmra.mxu0 %v794
      %v821 = vpop.f32.mrf.mxu0
      %v822 = vadd.f32 0.0, %v821
      %v823 = vpop.f32.mrf.mxu0
      %v824 = vadd.f32 0.0, %v823
      %825 = vmatmul.bf16.gmra.mxu0 %v797
      %v826 = vpop.f32.mrf.mxu0
      %v827 = vadd.f32 0.0, %v826
      %v828 = vpop.f32.mrf.mxu0
      %v829 = vadd.f32 0.0, %v828
      %830 = vdwg.mxu0
      %v831 = vadd.f32 %v757, %v812
      %v832 = vadd.f32 %v758, %v814
      %v833 = vadd.f32 %v759, %v817
      %v834 = vadd.f32 %v760, %v819
      %v835 = vadd.f32 %v761, %v822
      %v836 = vadd.f32 %v762, %v824
      %v837 = vadd.f32 %v763, %v827
      %v838 = vadd.f32 %v764, %v829
      %v839 = vld [vmem:[#allocation2 + $0x9] sm:$0xff]
      %v840 = vld [vmem:[#allocation2 + $0x11] sm:$0xff]
      %v841 = vld [vmem:[#allocation2 + $0x19] sm:$0xff]
      %v842 = vld [vmem:[#allocation2 + $0x21] sm:$0xff]
      %v843 = vld [vmem:[#allocation2 + $0x29] sm:$0xff]
      %v844 = vld [vmem:[#allocation2 + $0x31] sm:$0xff]
      %v845 = vld [vmem:[#allocation2 + $0x39] sm:$0xff]
      %v846 = vld [vmem:[#allocation2 + $0x41] sm:$0xff]
      %v847 = vpack.c.bf16 %v840, %v839
      %v848 = vpack.c.bf16 %v842, %v841
      %v849 = vpack.c.bf16 %v844, %v843
      %v850 = vpack.c.bf16 %v846, %v845
      %s851 = scalar_lea.vmem %s3, 8
      %v852 = vld [vmem:[%s851] sm:$0x3]
      %v854 = vsel %vm307, %v847, 0
      %v857 = vsel %vm307, %v848, 0
      %v860 = vsel %vm307, %v849, 0
      %v863 = vsel %vm307, %v850, 0
      %v866 = vsel %vm622, %v852, 0
      %868 = vmatpush.bf16.msra.mxu0 0
      %869 = vmatpush.bf16.msra.mxu0 0
      %870 = vmatpush.bf16.msra.mxu0 0
      %871 = vmatpush.bf16.msra.mxu0 0
      %872 = vmatpush.bf16.msra.mxu0 0
      %873 = vmatpush.bf16.msra.mxu0 0
      %874 = vmatpush.bf16.msra.mxu0 0
      %875 = vmatpush.bf16.msra.mxu0 %v866
      %876 = vmatmul.bf16.gmra.mxu0 %v854
      %v877 = vpop.f32.mrf.mxu0
      %v878 = vadd.f32 0.0, %v877
      %v879 = vpop.f32.mrf.mxu0
      %v880 = vadd.f32 0.0, %v879
      %881 = vmatmul.bf16.gmra.mxu0 %v857
      %v882 = vpop.f32.mrf.mxu0
      %v883 = vadd.f32 0.0, %v882
      %v884 = vpop.f32.mrf.mxu0
      %v885 = vadd.f32 0.0, %v884
      %886 = vmatmul.bf16.gmra.mxu0 %v860
      %v887 = vpop.f32.mrf.mxu0
      %v888 = vadd.f32 0.0, %v887
      %v889 = vpop.f32.mrf.mxu0
      %v890 = vadd.f32 0.0, %v889
      %891 = vmatmul.bf16.gmra.mxu0 %v863
      %v892 = vpop.f32.mrf.mxu0
      %v893 = vadd.f32 0.0, %v892
      %v894 = vpop.f32.mrf.mxu0
      %v895 = vadd.f32 0.0, %v894
      %896 = vdwg.mxu0
      %v897 = vadd.f32 %v831, %v878
      %v898 = vadd.f32 %v832, %v880
      %v899 = vadd.f32 %v833, %v883
      %v900 = vadd.f32 %v834, %v885
      %v901 = vadd.f32 %v835, %v888
      %v902 = vadd.f32 %v836, %v890
      %v903 = vadd.f32 %v837, %v893
      %v904 = vadd.f32 %v838, %v895
      %v905 = vld [vmem:[%s434 + $0x9] sm:$0xff]
      %v906 = vld [vmem:[%s434 + $0x11] sm:$0xff]
      %v907 = vld [vmem:[%s434 + $0x19] sm:$0xff]
      %v908 = vld [vmem:[%s434 + $0x21] sm:$0xff]
      %v909 = vld [vmem:[%s434 + $0x29] sm:$0xff]
      %v910 = vld [vmem:[%s434 + $0x31] sm:$0xff]
      %v911 = vld [vmem:[%s434 + $0x39] sm:$0xff]
      %v912 = vld [vmem:[%s434 + $0x41] sm:$0xff]
      %v913 = vpack.c.bf16 %v906, %v905
      %v914 = vpack.c.bf16 %v908, %v907
      %v915 = vpack.c.bf16 %v910, %v909
      %v916 = vpack.c.bf16 %v912, %v911
      %s917 = scalar_lea.vmem %s3, 10
      %v918 = vld [vmem:[%s917] sm:$0x3]
      %v920 = vsel %vm307, %v913, 0
      %v923 = vsel %vm307, %v914, 0
      %v926 = vsel %vm307, %v915, 0
      %v929 = vsel %vm307, %v916, 0
      %v932 = vsel %vm622, %v918, 0
      %934 = vmatpush.bf16.msra.mxu0 0
      %935 = vmatpush.bf16.msra.mxu0 0
      %936 = vmatpush.bf16.msra.mxu0 0
      %937 = vmatpush.bf16.msra.mxu0 0
      %938 = vmatpush.bf16.msra.mxu0 0
      %939 = vmatpush.bf16.msra.mxu0 0
      %940 = vmatpush.bf16.msra.mxu0 0
      %941 = vmatpush.bf16.msra.mxu0 %v932
      %942 = vmatmul.bf16.gmra.mxu0 %v920
      %v943 = vpop.f32.mrf.mxu0
      %v944 = vadd.f32 0.0, %v943
      %v945 = vpop.f32.mrf.mxu0
      %v946 = vadd.f32 0.0, %v945
      %947 = vmatmul.bf16.gmra.mxu0 %v923
      %v948 = vpop.f32.mrf.mxu0
      %v949 = vadd.f32 0.0, %v948
      %v950 = vpop.f32.mrf.mxu0
      %v951 = vadd.f32 0.0, %v950
      %952 = vmatmul.bf16.gmra.mxu0 %v926
      %v953 = vpop.f32.mrf.mxu0
      %v954 = vadd.f32 0.0, %v953
      %v955 = vpop.f32.mrf.mxu0
      %v956 = vadd.f32 0.0, %v955
      %957 = vmatmul.bf16.gmra.mxu0 %v929
      %v958 = vpop.f32.mrf.mxu0
      %v959 = vadd.f32 0.0, %v958
      %v960 = vpop.f32.mrf.mxu0
      %v961 = vadd.f32 0.0, %v960
      %962 = vdwg.mxu0
      %v963 = vadd.f32 %v897, %v944
      %v964 = vadd.f32 %v898, %v946
      %v965 = vadd.f32 %v899, %v949
      %v966 = vadd.f32 %v900, %v951
      %v967 = vadd.f32 %v901, %v954
      %v968 = vadd.f32 %v902, %v956
      %v969 = vadd.f32 %v903, %v959
      %v970 = vadd.f32 %v904, %v961
      %v971 = vld [vmem:[%s518 + $0x8] sm:$0xff]
      %v972 = vld [vmem:[%s518 + $0x10] sm:$0xff]
      %v973 = vld [vmem:[%s518 + $0x18] sm:$0xff]
      %v974 = vld [vmem:[%s518 + $0x20] sm:$0xff]
      %v975 = vld [vmem:[%s518 + $0x28] sm:$0xff]
      %v976 = vld [vmem:[%s518 + $0x30] sm:$0xff]
      %v977 = vld [vmem:[%s518 + $0x38] sm:$0xff]
      %v978 = vld [vmem:[%s518 + $0x40] sm:$0xff]
      %v979 = vmul.f32 %v971, %v546
      %v980 = vmul.f32 %v972, %v551
      %v981 = vmul.f32 %v973, %v556
      %v982 = vmul.f32 %v974, %v561
      %v983 = vmul.f32 %v975, %v566
      %v984 = vmul.f32 %v976, %v571
      %v985 = vmul.f32 %v977, %v576
      %v986 = vmul.f32 %v978, %v581
      %v987 = vpack.c.bf16 %v980, %v979
      %v988 = vpack.c.bf16 %v982, %v981
      %v989 = vpack.c.bf16 %v984, %v983
      %v990 = vpack.c.bf16 %v986, %v985
      %s991 = scalar_lea.vmem %s3, 12
      %v992 = vld [vmem:[%s991] sm:$0x3]
      %v994 = vsel %vm307, %v987, 0
      %v997 = vsel %vm307, %v988, 0
      %v1000 = vsel %vm307, %v989, 0
      %v1003 = vsel %vm307, %v990, 0
      %v1006 = vsel %vm622, %v992, 0
      %1008 = vmatpush.bf16.msra.mxu0 0
      %1009 = vmatpush.bf16.msra.mxu0 0
      %1010 = vmatpush.bf16.msra.mxu0 0
      %1011 = vmatpush.bf16.msra.mxu0 0
      %1012 = vmatpush.bf16.msra.mxu0 0
      %1013 = vmatpush.bf16.msra.mxu0 0
      %1014 = vmatpush.bf16.msra.mxu0 0
      %1015 = vmatpush.bf16.msra.mxu0 %v1006
      %1016 = vmatmul.bf16.gmra.mxu0 %v994
      %v1017 = vpop.f32.mrf.mxu0
      %v1018 = vadd.f32 0.0, %v1017
      %v1019 = vpop.f32.mrf.mxu0
      %v1020 = vadd.f32 0.0, %v1019
      %1021 = vmatmul.bf16.gmra.mxu0 %v997
      %v1022 = vpop.f32.mrf.mxu0
      %v1023 = vadd.f32 0.0, %v1022
      %v1024 = vpop.f32.mrf.mxu0
      %v1025 = vadd.f32 0.0, %v1024
      %1026 = vmatmul.bf16.gmra.mxu0 %v1000
      %v1027 = vpop.f32.mrf.mxu0
      %v1028 = vadd.f32 0.0, %v1027
      %v1029 = vpop.f32.mrf.mxu0
      %v1030 = vadd.f32 0.0, %v1029
      %1031 = vmatmul.bf16.gmra.mxu0 %v1003
      %v1032 = vpop.f32.mrf.mxu0
      %v1033 = vadd.f32 0.0, %v1032
      %v1034 = vpop.f32.mrf.mxu0
      %v1035 = vadd.f32 0.0, %v1034
      %1036 = vdwg.mxu0
      %v1037 = vadd.f32 %v963, %v1018
      %v1038 = vadd.f32 %v964, %v1020
      %v1039 = vadd.f32 %v965, %v1023
      %v1040 = vadd.f32 %v966, %v1025
      %v1041 = vadd.f32 %v967, %v1028
      %v1042 = vadd.f32 %v968, %v1030
      %v1043 = vadd.f32 %v969, %v1033
      %v1044 = vadd.f32 %v970, %v1035
      %v1045 = vld [vmem:[%s476 + $0x9] sm:$0xff]
      %v1046 = vld [vmem:[%s476 + $0x11] sm:$0xff]
      %v1047 = vld [vmem:[%s476 + $0x19] sm:$0xff]
      %v1048 = vld [vmem:[%s476 + $0x21] sm:$0xff]
      %v1049 = vld [vmem:[%s476 + $0x29] sm:$0xff]
      %v1050 = vld [vmem:[%s476 + $0x31] sm:$0xff]
      %v1051 = vld [vmem:[%s476 + $0x39] sm:$0xff]
      %v1052 = vld [vmem:[%s476 + $0x41] sm:$0xff]
      %v1053 = vpack.c.bf16 %v1046, %v1045
      %v1054 = vpack.c.bf16 %v1048, %v1047
      %v1055 = vpack.c.bf16 %v1050, %v1049
      %v1056 = vpack.c.bf16 %v1052, %v1051
      %s1057 = scalar_lea.vmem %s3, 14
      %v1058 = vld [vmem:[%s1057] sm:$0x3]
      %v1060 = vsel %vm307, %v1053, 0
      %v1063 = vsel %vm307, %v1054, 0
      %v1066 = vsel %vm307, %v1055, 0
      %v1069 = vsel %vm307, %v1056, 0
      %v1072 = vsel %vm622, %v1058, 0
      %1074 = vmatpush.bf16.msra.mxu0 0
      %1075 = vmatpush.bf16.msra.mxu0 0
      %1076 = vmatpush.bf16.msra.mxu0 0
      %1077 = vmatpush.bf16.msra.mxu0 0
      %1078 = vmatpush.bf16.msra.mxu0 0
      %1079 = vmatpush.bf16.msra.mxu0 0
      %1080 = vmatpush.bf16.msra.mxu0 0
      %1081 = vmatpush.bf16.msra.mxu0 %v1072
      %1082 = vmatmul.bf16.gmra.mxu0 %v1060
      %v1083 = vpop.f32.mrf.mxu0
      %v1084 = vadd.f32 0.0, %v1083
      %v1085 = vpop.f32.mrf.mxu0
      %v1086 = vadd.f32 0.0, %v1085
      %1087 = vmatmul.bf16.gmra.mxu0 %v1063
      %v1088 = vpop.f32.mrf.mxu0
      %v1089 = vadd.f32 0.0, %v1088
      %v1090 = vpop.f32.mrf.mxu0
      %v1091 = vadd.f32 0.0, %v1090
      %1092 = vmatmul.bf16.gmra.mxu0 %v1066
      %v1093 = vpop.f32.mrf.mxu0
      %v1094 = vadd.f32 0.0, %v1093
      %v1095 = vpop.f32.mrf.mxu0
      %v1096 = vadd.f32 0.0, %v1095
      %1097 = vmatmul.bf16.gmra.mxu0 %v1069
      %v1098 = vpop.f32.mrf.mxu0
      %v1099 = vadd.f32 0.0, %v1098
      %v1100 = vpop.f32.mrf.mxu0
      %v1101 = vadd.f32 0.0, %v1100
      %1102 = vdwg.mxu0
      %v1103 = vadd.f32 %v1037, %v1084
      %v1104 = vadd.f32 %v1038, %v1086
      %v1105 = vadd.f32 %v1039, %v1089
      %v1106 = vadd.f32 %v1040, %v1091
      %v1107 = vadd.f32 %v1041, %v1094
      %v1108 = vadd.f32 %v1042, %v1096
      %v1109 = vadd.f32 %v1043, %v1099
      %v1110 = vadd.f32 %v1044, %v1101
      %v1111 = vld [vmem:[%s518 + $0x9] sm:$0xff]
      %v1112 = vld [vmem:[%s518 + $0x11] sm:$0xff]
      %v1113 = vld [vmem:[%s518 + $0x19] sm:$0xff]
      %v1114 = vld [vmem:[%s518 + $0x21] sm:$0xff]
      %v1115 = vld [vmem:[%s518 + $0x29] sm:$0xff]
      %v1116 = vld [vmem:[%s518 + $0x31] sm:$0xff]
      %v1117 = vld [vmem:[%s518 + $0x39] sm:$0xff]
      %v1118 = vld [vmem:[%s518 + $0x41] sm:$0xff]
      %v1119 = vpack.c.bf16 %v1112, %v1111
      %v1120 = vpack.c.bf16 %v1114, %v1113
      %v1121 = vpack.c.bf16 %v1116, %v1115
      %v1122 = vpack.c.bf16 %v1118, %v1117
      %s1123 = scalar_lea.vmem %s3, 16
      %v1124 = vld [vmem:[%s1123] sm:$0x3]
      %v1126 = vsel %vm307, %v1119, 0
      %v1129 = vsel %vm307, %v1120, 0
      %v1132 = vsel %vm307, %v1121, 0
      %v1135 = vsel %vm307, %v1122, 0
      %v1138 = vsel %vm622, %v1124, 0
      %1140 = vmatpush.bf16.msra.mxu0 0
      %1141 = vmatpush.bf16.msra.mxu0 0
      %1142 = vmatpush.bf16.msra.mxu0 0
      %1143 = vmatpush.bf16.msra.mxu0 0
      %1144 = vmatpush.bf16.msra.mxu0 0
      %1145 = vmatpush.bf16.msra.mxu0 0
      %1146 = vmatpush.bf16.msra.mxu0 0
      %1147 = vmatpush.bf16.msra.mxu0 %v1138
      %1148 = vmatmul.bf16.gmra.mxu0 %v1126
      %v1149 = vpop.f32.mrf.mxu0
      %v1150 = vadd.f32 0.0, %v1149
      %v1151 = vpop.f32.mrf.mxu0
      %v1152 = vadd.f32 0.0, %v1151
      %1153 = vmatmul.bf16.gmra.mxu0 %v1129
      %v1154 = vpop.f32.mrf.mxu0
      %v1155 = vadd.f32 0.0, %v1154
      %v1156 = vpop.f32.mrf.mxu0
      %v1157 = vadd.f32 0.0, %v1156
      %1158 = vmatmul.bf16.gmra.mxu0 %v1132
      %v1159 = vpop.f32.mrf.mxu0
      %v1160 = vadd.f32 0.0, %v1159
      %v1161 = vpop.f32.mrf.mxu0
      %v1162 = vadd.f32 0.0, %v1161
      %1163 = vmatmul.bf16.gmra.mxu0 %v1135
      %v1164 = vpop.f32.mrf.mxu0
      %v1165 = vadd.f32 0.0, %v1164
      %v1166 = vpop.f32.mrf.mxu0
      %v1167 = vadd.f32 0.0, %v1166
      %1168 = vdwg.mxu0
      %v1169 = vadd.f32 %v1103, %v1150
      %v1170 = vadd.f32 %v1104, %v1152
      %v1171 = vadd.f32 %v1105, %v1155
      %v1172 = vadd.f32 %v1106, %v1157
      %v1173 = vadd.f32 %v1107, %v1160
      %v1174 = vadd.f32 %v1108, %v1162
      %v1175 = vadd.f32 %v1109, %v1165
      %v1176 = vadd.f32 %v1110, %v1167
      %v1177 = vld [vmem:[%s4] sm:$0x1]
      %v1179 = vperm.slane %v1177, 0
      %v1181 = vadd.f32 %v1169, %v1179
      %v1182 = vadd.f32 %v1170, %v1179
      %v1183 = vadd.f32 %v1171, %v1179
      %v1184 = vadd.f32 %v1172, %v1179
      %v1185 = vadd.f32 %v1173, %v1179
      %v1186 = vadd.f32 %v1174, %v1179
      %v1187 = vadd.f32 %v1175, %v1179
      %v1188 = vadd.f32 %v1176, %v1179
      %v1189 = vmax.f32 %v1181, 0.0
      %v1190 = vmax.f32 %v1182, 0.0
      %v1191 = vmax.f32 %v1183, 0.0
      %v1192 = vmax.f32 %v1184, 0.0
      %v1193 = vmax.f32 %v1185, 0.0
      %v1194 = vmax.f32 %v1186, 0.0
      %v1195 = vmax.f32 %v1187, 0.0
      %v1196 = vmax.f32 %v1188, 0.0
      %1197 = vst [vmem:[#allocation3] sm:$0xff] 0.0
      %1198 = vst [vmem:[#allocation3 + $0x8] sm:$0xff] 0.0
      %1199 = vst [vmem:[#allocation3 + $0x10] sm:$0xff] 0.0
      %1200 = vst [vmem:[#allocation3 + $0x18] sm:$0xff] 0.0
      %1201 = vst [vmem:[#allocation3 + $0x20] sm:$0xff] 0.0
      %1202 = vst [vmem:[#allocation3 + $0x28] sm:$0xff] 0.0
      %1203 = vst [vmem:[#allocation3 + $0x30] sm:$0xff] 0.0
      %1204 = vst [vmem:[#allocation3 + $0x38] sm:$0xff] 0.0
      %1205 = vst [vmem:[#allocation3 + $0x40] sm:$0xff] 0.0
      %1206 = vst [vmem:[#allocation3 + $0x48] sm:$0xff] 0.0
      %1207 = vst [vmem:[#allocation3 + $0x50] sm:$0x3] 0.0
      %1208 = vst [vmem:[#allocation3 + $0x9] sm:$0xff] %v1189
      %1209 = vst [vmem:[#allocation3 + $0x11] sm:$0xff] %v1190
      %1210 = vst [vmem:[#allocation3 + $0x19] sm:$0xff] %v1191
      %1211 = vst [vmem:[#allocation3 + $0x21] sm:$0xff] %v1192
      %1212 = vst [vmem:[#allocation3 + $0x29] sm:$0xff] %v1193
      %1213 = vst [vmem:[#allocation3 + $0x31] sm:$0xff] %v1194
      %1214 = vst [vmem:[#allocation3 + $0x39] sm:$0xff] %v1195
      %1215 = vst [vmem:[#allocation3 + $0x41] sm:$0xff] %v1196
      %v1216 = vld [vmem:[#allocation3] sm:$0xff]
      %v1217 = vld [vmem:[#allocation3 + $0x8] sm:$0xff]
      %v1218 = vld [vmem:[#allocation3 + $0x10] sm:$0xff]
      %v1219 = vld [vmem:[#allocation3 + $0x18] sm:$0xff]
      %v1220 = vld [vmem:[#allocation3 + $0x20] sm:$0xff]
      %v1221 = vld [vmem:[#allocation3 + $0x28] sm:$0xff]
      %v1222 = vld [vmem:[#allocation3 + $0x30] sm:$0xff]
      %v1223 = vld [vmem:[#allocation3 + $0x38] sm:$0xff]
      %v1224 = vld [vmem:[%s7] sm:$0xff]
      %v1225 = vld [vmem:[%s7 + $0x8] sm:$0xff]
      %v1226 = vld [vmem:[%s7 + $0x10] sm:$0xff]
      %v1227 = vld [vmem:[%s7 + $0x18] sm:$0xff]
      %v1228 = vld [vmem:[%s7 + $0x20] sm:$0xff]
      %v1229 = vld [vmem:[%s7 + $0x28] sm:$0xff]
      %v1230 = vld [vmem:[%s7 + $0x30] sm:$0xff]
      %v1231 = vld [vmem:[%s7 + $0x38] sm:$0xff]
      %1233 = vset.pattern.permute.xlu0 0
      %1234 = vperm.xlu0 %1233, %v1224
      %v1235 = vpop.permute.xlu0 %1234
      %1238 = vset.pattern.permute.xlu0 0
      %1239 = vperm.xlu0 %1238, %v1225
      %v1240 = vpop.permute.xlu0 %1239
      %1243 = vset.pattern.permute.xlu0 0
      %1244 = vperm.xlu0 %1243, %v1226
      %v1245 = vpop.permute.xlu0 %1244
      %1248 = vset.pattern.permute.xlu0 0
      %1249 = vperm.xlu0 %1248, %v1227
      %v1250 = vpop.permute.xlu0 %1249
      %1253 = vset.pattern.permute.xlu0 0
      %1254 = vperm.xlu0 %1253, %v1228
      %v1255 = vpop.permute.xlu0 %1254
      %1258 = vset.pattern.permute.xlu0 0
      %1259 = vperm.xlu0 %1258, %v1229
      %v1260 = vpop.permute.xlu0 %1259
      %1263 = vset.pattern.permute.xlu0 0
      %1264 = vperm.xlu0 %1263, %v1230
      %v1265 = vpop.permute.xlu0 %1264
      %1268 = vset.pattern.permute.xlu0 0
      %1269 = vperm.xlu0 %1268, %v1231
      %v1270 = vpop.permute.xlu0 %1269
      %v1272 = vmul.f32 %v1216, %v1235
      %v1273 = vmul.f32 %v1217, %v1240
      %v1274 = vmul.f32 %v1218, %v1245
      %v1275 = vmul.f32 %v1219, %v1250
      %v1276 = vmul.f32 %v1220, %v1255
      %v1277 = vmul.f32 %v1221, %v1260
      %v1278 = vmul.f32 %v1222, %v1265
      %v1279 = vmul.f32 %v1223, %v1270
      %v1280 = vpack.c.bf16 %v1273, %v1272
      %v1281 = vpack.c.bf16 %v1275, %v1274
      %v1282 = vpack.c.bf16 %v1277, %v1276
      %v1283 = vpack.c.bf16 %v1279, %v1278
      %v1284 = vld [vmem:[%s5] sm:$0xf]
      %v1285 = vld [vmem:[%s5 + $0x4] sm:$0xf]
      %v1286 = vld [vmem:[%s5 + $0x8] sm:$0xf]
      %v1287 = vld [vmem:[%s5 + $0xc] sm:$0xf]
      %v1288 = vld [vmem:[%s5 + $0x10] sm:$0xf]
      %v1289 = vld [vmem:[%s5 + $0x14] sm:$0xf]
      %v1290 = vld [vmem:[%s5 + $0x18] sm:$0xf]
      %v1291 = vld [vmem:[%s5 + $0x1c] sm:$0xf]
      %v1292 = vld [vmem:[%s5 + $0x20] sm:$0xf]
      %v1293 = vld [vmem:[%s5 + $0x24] sm:$0xf]
      %v1294 = vld [vmem:[%s5 + $0x28] sm:$0xf]
      %v1295 = vld [vmem:[%s5 + $0x2c] sm:$0xf]
      %v1296 = vld [vmem:[%s5 + $0x30] sm:$0xf]
      %v1297 = vld [vmem:[%s5 + $0x34] sm:$0xf]
      %v1298 = vld [vmem:[%s5 + $0x38] sm:$0xf]
      %v1299 = vld [vmem:[%s5 + $0x3c] sm:$0xf]
      %v1300 = vld [vmem:[#allocation3 + $0x1] sm:$0xff]
      %v1301 = vld [vmem:[#allocation3 + $0x9] sm:$0xff]
      %v1302 = vld [vmem:[#allocation3 + $0x11] sm:$0xff]
      %v1303 = vld [vmem:[#allocation3 + $0x19] sm:$0xff]
      %v1304 = vld [vmem:[#allocation3 + $0x21] sm:$0xff]
      %v1305 = vld [vmem:[#allocation3 + $0x29] sm:$0xff]
      %v1306 = vld [vmem:[#allocation3 + $0x31] sm:$0xff]
      %v1307 = vld [vmem:[#allocation3 + $0x39] sm:$0xff]
      %v1308 = vpack.c.bf16 %v1301, %v1300
      %v1309 = vpack.c.bf16 %v1303, %v1302
      %v1310 = vpack.c.bf16 %v1305, %v1304
      %v1311 = vpack.c.bf16 %v1307, %v1306
      %s1312 = scalar_lea.vmem %s5, 64
      %v1313 = vld [vmem:[%s1312] sm:$0xf]
      %v1314 = vld [vmem:[%s1312 + $0x4] sm:$0xf]
      %v1315 = vld [vmem:[%s1312 + $0x8] sm:$0xf]
      %v1316 = vld [vmem:[%s1312 + $0xc] sm:$0xf]
      %v1317 = vld [vmem:[%s1312 + $0x10] sm:$0xf]
      %v1318 = vld [vmem:[%s1312 + $0x14] sm:$0xf]
      %v1319 = vld [vmem:[%s1312 + $0x18] sm:$0xf]
      %v1320 = vld [vmem:[%s1312 + $0x1c] sm:$0xf]
      %v1321 = vld [vmem:[%s1312 + $0x20] sm:$0xf]
      %v1322 = vld [vmem:[%s1312 + $0x24] sm:$0xf]
      %v1323 = vld [vmem:[%s1312 + $0x28] sm:$0xf]
      %v1324 = vld [vmem:[%s1312 + $0x2c] sm:$0xf]
      %v1325 = vld [vmem:[%s1312 + $0x30] sm:$0xf]
      %v1326 = vld [vmem:[%s1312 + $0x34] sm:$0xf]
      %v1327 = vld [vmem:[%s1312 + $0x38] sm:$0xf]
      %v1328 = vld [vmem:[%s1312 + $0x3c] sm:$0xf]
      %v1345 = vunpack.c.l.b16 %v1313
      %v1346 = vunpack.c.l.b16 %v1314
      %v1347 = vunpack.c.l.b16 %v1315
      %v1348 = vunpack.c.l.b16 %v1316
      %v1349 = vunpack.c.l.b16 %v1317
      %v1350 = vunpack.c.l.b16 %v1318
      %v1351 = vunpack.c.l.b16 %v1319
      %v1352 = vunpack.c.l.b16 %v1320
      %v1353 = vunpack.c.l.b16 %v1321
      %v1354 = vunpack.c.l.b16 %v1322
      %v1355 = vunpack.c.l.b16 %v1323
      %v1356 = vunpack.c.l.b16 %v1324
      %v1357 = vunpack.c.l.b16 %v1325
      %v1358 = vunpack.c.l.b16 %v1326
      %v1359 = vunpack.c.l.b16 %v1327
      %v1360 = vunpack.c.l.b16 %v1328
      %v1361 = vpack.c.b16 %v1346, %v1345
      %v1362 = vpack.c.b16 %v1348, %v1347
      %v1363 = vpack.c.b16 %v1350, %v1349
      %v1364 = vpack.c.b16 %v1352, %v1351
      %v1365 = vpack.c.b16 %v1354, %v1353
      %v1366 = vpack.c.b16 %v1356, %v1355
      %v1367 = vpack.c.b16 %v1358, %v1357
      %v1368 = vpack.c.b16 %v1360, %v1359
      %1377 = vmatpush.bf16.msra.mxu0 %v1368
      %1378 = vmatpush.bf16.msra.mxu0 %v1367
      %1379 = vmatpush.bf16.msra.mxu0 %v1366
      %1380 = vmatpush.bf16.msra.mxu0 %v1365
      %1381 = vmatpush.bf16.msra.mxu0 %v1364
      %1382 = vmatpush.bf16.msra.mxu0 %v1363
      %1383 = vmatpush.bf16.msra.mxu0 %v1362
      %1384 = vmatpush.bf16.msra.mxu0 %v1361
      %1385 = vmatmul.bf16.gmra.mxu0 %v1308
      %v1386 = vpop.f32.mrf.mxu0
      %v1387 = vadd.f32 0.0, %v1386
      %v1388 = vpop.f32.mrf.mxu0
      %v1389 = vadd.f32 0.0, %v1388
      %1390 = vmatmul.bf16.gmra.mxu0 %v1309
      %v1391 = vpop.f32.mrf.mxu0
      %v1392 = vadd.f32 0.0, %v1391
      %v1393 = vpop.f32.mrf.mxu0
      %v1394 = vadd.f32 0.0, %v1393
      %1395 = vmatmul.bf16.gmra.mxu0 %v1310
      %v1396 = vpop.f32.mrf.mxu0
      %v1397 = vadd.f32 0.0, %v1396
      %v1398 = vpop.f32.mrf.mxu0
      %v1399 = vadd.f32 0.0, %v1398
      %1400 = vmatmul.bf16.gmra.mxu0 %v1311
      %v1401 = vpop.f32.mrf.mxu0
      %v1402 = vadd.f32 0.0, %v1401
      %v1403 = vpop.f32.mrf.mxu0
      %v1404 = vadd.f32 0.0, %v1403
      %1405 = vdwg.mxu0
      %v1422 = vunpack.c.l.b16 %v1284
      %v1423 = vunpack.c.l.b16 %v1285
      %v1424 = vunpack.c.l.b16 %v1286
      %v1425 = vunpack.c.l.b16 %v1287
      %v1426 = vunpack.c.l.b16 %v1288
      %v1427 = vunpack.c.l.b16 %v1289
      %v1428 = vunpack.c.l.b16 %v1290
      %v1429 = vunpack.c.l.b16 %v1291
      %v1430 = vunpack.c.l.b16 %v1292
      %v1431 = vunpack.c.l.b16 %v1293
      %v1432 = vunpack.c.l.b16 %v1294
      %v1433 = vunpack.c.l.b16 %v1295
      %v1434 = vunpack.c.l.b16 %v1296
      %v1435 = vunpack.c.l.b16 %v1297
      %v1436 = vunpack.c.l.b16 %v1298
      %v1437 = vunpack.c.l.b16 %v1299
      %v1438 = vpack.c.b16 %v1423, %v1422
      %v1439 = vpack.c.b16 %v1425, %v1424
      %v1440 = vpack.c.b16 %v1427, %v1426
      %v1441 = vpack.c.b16 %v1429, %v1428
      %v1442 = vpack.c.b16 %v1431, %v1430
      %v1443 = vpack.c.b16 %v1433, %v1432
      %v1444 = vpack.c.b16 %v1435, %v1434
      %v1445 = vpack.c.b16 %v1437, %v1436
      %1454 = vmatpush.bf16.msra.mxu0 %v1445
      %1455 = vmatpush.bf16.msra.mxu0 %v1444
      %1456 = vmatpush.bf16.msra.mxu0 %v1443
      %1457 = vmatpush.bf16.msra.mxu0 %v1442
      %1458 = vmatpush.bf16.msra.mxu0 %v1441
      %1459 = vmatpush.bf16.msra.mxu0 %v1440
      %1460 = vmatpush.bf16.msra.mxu0 %v1439
      %1461 = vmatpush.bf16.msra.mxu0 %v1438
      %1462 = vmatmul.bf16.gmra.mxu0 %v1280
      %v1463 = vpop.f32.mrf.mxu0
      %v1464 = vadd.f32 %v1387, %v1463
      %v1465 = vpop.f32.mrf.mxu0
      %v1466 = vadd.f32 %v1389, %v1465
      %1467 = vmatmul.bf16.gmra.mxu0 %v1281
      %v1468 = vpop.f32.mrf.mxu0
      %v1469 = vadd.f32 %v1392, %v1468
      %v1470 = vpop.f32.mrf.mxu0
      %v1471 = vadd.f32 %v1394, %v1470
      %1472 = vmatmul.bf16.gmra.mxu0 %v1282
      %v1473 = vpop.f32.mrf.mxu0
      %v1474 = vadd.f32 %v1397, %v1473
      %v1475 = vpop.f32.mrf.mxu0
      %v1476 = vadd.f32 %v1399, %v1475
      %1477 = vmatmul.bf16.gmra.mxu0 %v1283
      %v1478 = vpop.f32.mrf.mxu0
      %v1479 = vadd.f32 %v1402, %v1478
      %v1480 = vpop.f32.mrf.mxu0
      %v1481 = vadd.f32 %v1404, %v1480
      %1482 = vdwg.mxu0
      %v1483 = vld [vmem:[#allocation3 + $0x2] sm:$0xff]
      %v1484 = vld [vmem:[#allocation3 + $0xa] sm:$0xff]
      %v1485 = vld [vmem:[#allocation3 + $0x12] sm:$0xff]
      %v1486 = vld [vmem:[#allocation3 + $0x1a] sm:$0xff]
      %v1487 = vld [vmem:[#allocation3 + $0x22] sm:$0xff]
      %v1488 = vld [vmem:[#allocation3 + $0x2a] sm:$0xff]
      %v1489 = vld [vmem:[#allocation3 + $0x32] sm:$0xff]
      %v1490 = vld [vmem:[#allocation3 + $0x3a] sm:$0xff]
      %s1491 = scalar_lea.vmem %s7, 64
      %v1492 = vld [vmem:[%s1491] sm:$0xff]
      %v1493 = vld [vmem:[%s1491 + $0x8] sm:$0xff]
      %v1494 = vld [vmem:[%s1491 + $0x10] sm:$0xff]
      %v1495 = vld [vmem:[%s1491 + $0x18] sm:$0xff]
      %v1496 = vld [vmem:[%s1491 + $0x20] sm:$0xff]
      %v1497 = vld [vmem:[%s1491 + $0x28] sm:$0xff]
      %v1498 = vld [vmem:[%s1491 + $0x30] sm:$0xff]
      %v1499 = vld [vmem:[%s1491 + $0x38] sm:$0xff]
      %1501 = vset.pattern.permute.xlu0 0
      %1502 = vperm.xlu0 %1501, %v1492
      %v1503 = vpop.permute.xlu0 %1502
      %1506 = vset.pattern.permute.xlu0 0
      %1507 = vperm.xlu0 %1506, %v1493
      %v1508 = vpop.permute.xlu0 %1507
      %1511 = vset.pattern.permute.xlu0 0
      %1512 = vperm.xlu0 %1511, %v1494
      %v1513 = vpop.permute.xlu0 %1512
      %1516 = vset.pattern.permute.xlu0 0
      %1517 = vperm.xlu0 %1516, %v1495
      %v1518 = vpop.permute.xlu0 %1517
      %1521 = vset.pattern.permute.xlu0 0
      %1522 = vperm.xlu0 %1521, %v1496
      %v1523 = vpop.permute.xlu0 %1522
      %1526 = vset.pattern.permute.xlu0 0
      %1527 = vperm.xlu0 %1526, %v1497
      %v1528 = vpop.permute.xlu0 %1527
      %1531 = vset.pattern.permute.xlu0 0
      %1532 = vperm.xlu0 %1531, %v1498
      %v1533 = vpop.permute.xlu0 %1532
      %1536 = vset.pattern.permute.xlu0 0
      %1537 = vperm.xlu0 %1536, %v1499
      %v1538 = vpop.permute.xlu0 %1537
      %v1540 = vmul.f32 %v1483, %v1503
      %v1541 = vmul.f32 %v1484, %v1508
      %v1542 = vmul.f32 %v1485, %v1513
      %v1543 = vmul.f32 %v1486, %v1518
      %v1544 = vmul.f32 %v1487, %v1523
      %v1545 = vmul.f32 %v1488, %v1528
      %v1546 = vmul.f32 %v1489, %v1533
      %v1547 = vmul.f32 %v1490, %v1538
      %v1548 = vpack.c.bf16 %v1541, %v1540
      %v1549 = vpack.c.bf16 %v1543, %v1542
      %v1550 = vpack.c.bf16 %v1545, %v1544
      %v1551 = vpack.c.bf16 %v1547, %v1546
      %s1552 = scalar_lea.vmem %s5, 128
      %v1553 = vld [vmem:[%s1552] sm:$0xf]
      %v1554 = vld [vmem:[%s1552 + $0x4] sm:$0xf]
      %v1555 = vld [vmem:[%s1552 + $0x8] sm:$0xf]
      %v1556 = vld [vmem:[%s1552 + $0xc] sm:$0xf]
      %v1557 = vld [vmem:[%s1552 + $0x10] sm:$0xf]
      %v1558 = vld [vmem:[%s1552 + $0x14] sm:$0xf]
      %v1559 = vld [vmem:[%s1552 + $0x18] sm:$0xf]
      %v1560 = vld [vmem:[%s1552 + $0x1c] sm:$0xf]
      %v1561 = vld [vmem:[%s1552 + $0x20] sm:$0xf]
      %v1562 = vld [vmem:[%s1552 + $0x24] sm:$0xf]
      %v1563 = vld [vmem:[%s1552 + $0x28] sm:$0xf]
      %v1564 = vld [vmem:[%s1552 + $0x2c] sm:$0xf]
      %v1565 = vld [vmem:[%s1552 + $0x30] sm:$0xf]
      %v1566 = vld [vmem:[%s1552 + $0x34] sm:$0xf]
      %v1567 = vld [vmem:[%s1552 + $0x38] sm:$0xf]
      %v1568 = vld [vmem:[%s1552 + $0x3c] sm:$0xf]
      %v1585 = vunpack.c.l.b16 %v1553
      %v1586 = vunpack.c.l.b16 %v1554
      %v1587 = vunpack.c.l.b16 %v1555
      %v1588 = vunpack.c.l.b16 %v1556
      %v1589 = vunpack.c.l.b16 %v1557
      %v1590 = vunpack.c.l.b16 %v1558
      %v1591 = vunpack.c.l.b16 %v1559
      %v1592 = vunpack.c.l.b16 %v1560
      %v1593 = vunpack.c.l.b16 %v1561
      %v1594 = vunpack.c.l.b16 %v1562
      %v1595 = vunpack.c.l.b16 %v1563
      %v1596 = vunpack.c.l.b16 %v1564
      %v1597 = vunpack.c.l.b16 %v1565
      %v1598 = vunpack.c.l.b16 %v1566
      %v1599 = vunpack.c.l.b16 %v1567
      %v1600 = vunpack.c.l.b16 %v1568
      %v1601 = vpack.c.b16 %v1586, %v1585
      %v1602 = vpack.c.b16 %v1588, %v1587
      %v1603 = vpack.c.b16 %v1590, %v1589
      %v1604 = vpack.c.b16 %v1592, %v1591
      %v1605 = vpack.c.b16 %v1594, %v1593
      %v1606 = vpack.c.b16 %v1596, %v1595
      %v1607 = vpack.c.b16 %v1598, %v1597
      %v1608 = vpack.c.b16 %v1600, %v1599
      %1617 = vmatpush.bf16.msra.mxu0 %v1608
      %1618 = vmatpush.bf16.msra.mxu0 %v1607
      %1619 = vmatpush.bf16.msra.mxu0 %v1606
      %1620 = vmatpush.bf16.msra.mxu0 %v1605
      %1621 = vmatpush.bf16.msra.mxu0 %v1604
      %1622 = vmatpush.bf16.msra.mxu0 %v1603
      %1623 = vmatpush.bf16.msra.mxu0 %v1602
      %1624 = vmatpush.bf16.msra.mxu0 %v1601
      %1625 = vmatmul.bf16.gmra.mxu0 %v1548
      %v1626 = vpop.f32.mrf.mxu0
      %v1627 = vadd.f32 0.0, %v1626
      %v1628 = vpop.f32.mrf.mxu0
      %v1629 = vadd.f32 0.0, %v1628
      %1630 = vmatmul.bf16.gmra.mxu0 %v1549
      %v1631 = vpop.f32.mrf.mxu0
      %v1632 = vadd.f32 0.0, %v1631
      %v1633 = vpop.f32.mrf.mxu0
      %v1634 = vadd.f32 0.0, %v1633
      %1635 = vmatmul.bf16.gmra.mxu0 %v1550
      %v1636 = vpop.f32.mrf.mxu0
      %v1637 = vadd.f32 0.0, %v1636
      %v1638 = vpop.f32.mrf.mxu0
      %v1639 = vadd.f32 0.0, %v1638
      %1640 = vmatmul.bf16.gmra.mxu0 %v1551
      %v1641 = vpop.f32.mrf.mxu0
      %v1642 = vadd.f32 0.0, %v1641
      %v1643 = vpop.f32.mrf.mxu0
      %v1644 = vadd.f32 0.0, %v1643
      %1645 = vdwg.mxu0
      %v1646 = vadd.f32 %v1464, %v1627
      %v1647 = vadd.f32 %v1466, %v1629
      %v1648 = vadd.f32 %v1469, %v1632
      %v1649 = vadd.f32 %v1471, %v1634
      %v1650 = vadd.f32 %v1474, %v1637
      %v1651 = vadd.f32 %v1476, %v1639
      %v1652 = vadd.f32 %v1479, %v1642
      %v1653 = vadd.f32 %v1481, %v1644
      %v1654 = vld [vmem:[#allocation3 + $0x8] sm:$0xff]
      %v1655 = vld [vmem:[#allocation3 + $0x10] sm:$0xff]
      %v1656 = vld [vmem:[#allocation3 + $0x18] sm:$0xff]
      %v1657 = vld [vmem:[#allocation3 + $0x20] sm:$0xff]
      %v1658 = vld [vmem:[#allocation3 + $0x28] sm:$0xff]
      %v1659 = vld [vmem:[#allocation3 + $0x30] sm:$0xff]
      %v1660 = vld [vmem:[#allocation3 + $0x38] sm:$0xff]
      %v1661 = vld [vmem:[#allocation3 + $0x40] sm:$0xff]
      %v1662 = vmul.f32 %v1654, %v1235
      %v1663 = vmul.f32 %v1655, %v1240
      %v1664 = vmul.f32 %v1656, %v1245
      %v1665 = vmul.f32 %v1657, %v1250
      %v1666 = vmul.f32 %v1658, %v1255
      %v1667 = vmul.f32 %v1659, %v1260
      %v1668 = vmul.f32 %v1660, %v1265
      %v1669 = vmul.f32 %v1661, %v1270
      %v1670 = vpack.c.bf16 %v1663, %v1662
      %v1671 = vpack.c.bf16 %v1665, %v1664
      %v1672 = vpack.c.bf16 %v1667, %v1666
      %v1673 = vpack.c.bf16 %v1669, %v1668
      %s1674 = scalar_lea.vmem %s5, 192
      %v1675 = vld [vmem:[%s1674] sm:$0xf]
      %v1676 = vld [vmem:[%s1674 + $0x4] sm:$0xf]
      %v1677 = vld [vmem:[%s1674 + $0x8] sm:$0xf]
      %v1678 = vld [vmem:[%s1674 + $0xc] sm:$0xf]
      %v1679 = vld [vmem:[%s1674 + $0x10] sm:$0xf]
      %v1680 = vld [vmem:[%s1674 + $0x14] sm:$0xf]
      %v1681 = vld [vmem:[%s1674 + $0x18] sm:$0xf]
      %v1682 = vld [vmem:[%s1674 + $0x1c] sm:$0xf]
      %v1683 = vld [vmem:[%s1674 + $0x20] sm:$0xf]
      %v1684 = vld [vmem:[%s1674 + $0x24] sm:$0xf]
      %v1685 = vld [vmem:[%s1674 + $0x28] sm:$0xf]
      %v1686 = vld [vmem:[%s1674 + $0x2c] sm:$0xf]
      %v1687 = vld [vmem:[%s1674 + $0x30] sm:$0xf]
      %v1688 = vld [vmem:[%s1674 + $0x34] sm:$0xf]
      %v1689 = vld [vmem:[%s1674 + $0x38] sm:$0xf]
      %v1690 = vld [vmem:[%s1674 + $0x3c] sm:$0xf]
      %v1707 = vunpack.c.l.b16 %v1675
      %v1708 = vunpack.c.l.b16 %v1676
      %v1709 = vunpack.c.l.b16 %v1677
      %v1710 = vunpack.c.l.b16 %v1678
      %v1711 = vunpack.c.l.b16 %v1679
      %v1712 = vunpack.c.l.b16 %v1680
      %v1713 = vunpack.c.l.b16 %v1681
      %v1714 = vunpack.c.l.b16 %v1682
      %v1715 = vunpack.c.l.b16 %v1683
      %v1716 = vunpack.c.l.b16 %v1684
      %v1717 = vunpack.c.l.b16 %v1685
      %v1718 = vunpack.c.l.b16 %v1686
      %v1719 = vunpack.c.l.b16 %v1687
      %v1720 = vunpack.c.l.b16 %v1688
      %v1721 = vunpack.c.l.b16 %v1689
      %v1722 = vunpack.c.l.b16 %v1690
      %v1723 = vpack.c.b16 %v1708, %v1707
      %v1724 = vpack.c.b16 %v1710, %v1709
      %v1725 = vpack.c.b16 %v1712, %v1711
      %v1726 = vpack.c.b16 %v1714, %v1713
      %v1727 = vpack.c.b16 %v1716, %v1715
      %v1728 = vpack.c.b16 %v1718, %v1717
      %v1729 = vpack.c.b16 %v1720, %v1719
      %v1730 = vpack.c.b16 %v1722, %v1721
      %1739 = vmatpush.bf16.msra.mxu0 %v1730
      %1740 = vmatpush.bf16.msra.mxu0 %v1729
      %1741 = vmatpush.bf16.msra.mxu0 %v1728
      %1742 = vmatpush.bf16.msra.mxu0 %v1727
      %1743 = vmatpush.bf16.msra.mxu0 %v1726
      %1744 = vmatpush.bf16.msra.mxu0 %v1725
      %1745 = vmatpush.bf16.msra.mxu0 %v1724
      %1746 = vmatpush.bf16.msra.mxu0 %v1723
      %1747 = vmatmul.bf16.gmra.mxu0 %v1670
      %v1748 = vpop.f32.mrf.mxu0
      %v1749 = vadd.f32 0.0, %v1748
      %v1750 = vpop.f32.mrf.mxu0
      %v1751 = vadd.f32 0.0, %v1750
      %1752 = vmatmul.bf16.gmra.mxu0 %v1671
      %v1753 = vpop.f32.mrf.mxu0
      %v1754 = vadd.f32 0.0, %v1753
      %v1755 = vpop.f32.mrf.mxu0
      %v1756 = vadd.f32 0.0, %v1755
      %1757 = vmatmul.bf16.gmra.mxu0 %v1672
      %v1758 = vpop.f32.mrf.mxu0
      %v1759 = vadd.f32 0.0, %v1758
      %v1760 = vpop.f32.mrf.mxu0
      %v1761 = vadd.f32 0.0, %v1760
      %1762 = vmatmul.bf16.gmra.mxu0 %v1673
      %v1763 = vpop.f32.mrf.mxu0
      %v1764 = vadd.f32 0.0, %v1763
      %v1765 = vpop.f32.mrf.mxu0
      %v1766 = vadd.f32 0.0, %v1765
      %1767 = vdwg.mxu0
      %v1768 = vadd.f32 %v1646, %v1749
      %v1769 = vadd.f32 %v1647, %v1751
      %v1770 = vadd.f32 %v1648, %v1754
      %v1771 = vadd.f32 %v1649, %v1756
      %v1772 = vadd.f32 %v1650, %v1759
      %v1773 = vadd.f32 %v1651, %v1761
      %v1774 = vadd.f32 %v1652, %v1764
      %v1775 = vadd.f32 %v1653, %v1766
      %v1776 = vld [vmem:[#allocation3 + $0x9] sm:$0xff]
      %v1777 = vld [vmem:[#allocation3 + $0x11] sm:$0xff]
      %v1778 = vld [vmem:[#allocation3 + $0x19] sm:$0xff]
      %v1779 = vld [vmem:[#allocation3 + $0x21] sm:$0xff]
      %v1780 = vld [vmem:[#allocation3 + $0x29] sm:$0xff]
      %v1781 = vld [vmem:[#allocation3 + $0x31] sm:$0xff]
      %v1782 = vld [vmem:[#allocation3 + $0x39] sm:$0xff]
      %v1783 = vld [vmem:[#allocation3 + $0x41] sm:$0xff]
      %v1784 = vpack.c.bf16 %v1777, %v1776
      %v1785 = vpack.c.bf16 %v1779, %v1778
      %v1786 = vpack.c.bf16 %v1781, %v1780
      %v1787 = vpack.c.bf16 %v1783, %v1782
      %s1788 = scalar_lea.vmem %s5, 256
      %v1789 = vld [vmem:[%s1788] sm:$0xf]
      %v1790 = vld [vmem:[%s1788 + $0x4] sm:$0xf]
      %v1791 = vld [vmem:[%s1788 + $0x8] sm:$0xf]
      %v1792 = vld [vmem:[%s1788 + $0xc] sm:$0xf]
      %v1793 = vld [vmem:[%s1788 + $0x10] sm:$0xf]
      %v1794 = vld [vmem:[%s1788 + $0x14] sm:$0xf]
      %v1795 = vld [vmem:[%s1788 + $0x18] sm:$0xf]
      %v1796 = vld [vmem:[%s1788 + $0x1c] sm:$0xf]
      %v1797 = vld [vmem:[%s1788 + $0x20] sm:$0xf]
      %v1798 = vld [vmem:[%s1788 + $0x24] sm:$0xf]
      %v1799 = vld [vmem:[%s1788 + $0x28] sm:$0xf]
      %v1800 = vld [vmem:[%s1788 + $0x2c] sm:$0xf]
      %v1801 = vld [vmem:[%s1788 + $0x30] sm:$0xf]
      %v1802 = vld [vmem:[%s1788 + $0x34] sm:$0xf]
      %v1803 = vld [vmem:[%s1788 + $0x38] sm:$0xf]
      %v1804 = vld [vmem:[%s1788 + $0x3c] sm:$0xf]
      %v1821 = vunpack.c.l.b16 %v1789
      %v1822 = vunpack.c.l.b16 %v1790
      %v1823 = vunpack.c.l.b16 %v1791
      %v1824 = vunpack.c.l.b16 %v1792
      %v1825 = vunpack.c.l.b16 %v1793
      %v1826 = vunpack.c.l.b16 %v1794
      %v1827 = vunpack.c.l.b16 %v1795
      %v1828 = vunpack.c.l.b16 %v1796
      %v1829 = vunpack.c.l.b16 %v1797
      %v1830 = vunpack.c.l.b16 %v1798
      %v1831 = vunpack.c.l.b16 %v1799
      %v1832 = vunpack.c.l.b16 %v1800
      %v1833 = vunpack.c.l.b16 %v1801
      %v1834 = vunpack.c.l.b16 %v1802
      %v1835 = vunpack.c.l.b16 %v1803
      %v1836 = vunpack.c.l.b16 %v1804
      %v1837 = vpack.c.b16 %v1822, %v1821
      %v1838 = vpack.c.b16 %v1824, %v1823
      %v1839 = vpack.c.b16 %v1826, %v1825
      %v1840 = vpack.c.b16 %v1828, %v1827
      %v1841 = vpack.c.b16 %v1830, %v1829
      %v1842 = vpack.c.b16 %v1832, %v1831
      %v1843 = vpack.c.b16 %v1834, %v1833
      %v1844 = vpack.c.b16 %v1836, %v1835
      %1853 = vmatpush.bf16.msra.mxu0 %v1844
      %1854 = vmatpush.bf16.msra.mxu0 %v1843
      %1855 = vmatpush.bf16.msra.mxu0 %v1842
      %1856 = vmatpush.bf16.msra.mxu0 %v1841
      %1857 = vmatpush.bf16.msra.mxu0 %v1840
      %1858 = vmatpush.bf16.msra.mxu0 %v1839
      %1859 = vmatpush.bf16.msra.mxu0 %v1838
      %1860 = vmatpush.bf16.msra.mxu0 %v1837
      %1861 = vmatmul.bf16.gmra.mxu0 %v1784
      %v1862 = vpop.f32.mrf.mxu0
      %v1863 = vadd.f32 0.0, %v1862
      %v1864 = vpop.f32.mrf.mxu0
      %v1865 = vadd.f32 0.0, %v1864
      %1866 = vmatmul.bf16.gmra.mxu0 %v1785
      %v1867 = vpop.f32.mrf.mxu0
      %v1868 = vadd.f32 0.0, %v1867
      %v1869 = vpop.f32.mrf.mxu0
      %v1870 = vadd.f32 0.0, %v1869
      %1871 = vmatmul.bf16.gmra.mxu0 %v1786
      %v1872 = vpop.f32.mrf.mxu0
      %v1873 = vadd.f32 0.0, %v1872
      %v1874 = vpop.f32.mrf.mxu0
      %v1875 = vadd.f32 0.0, %v1874
      %1876 = vmatmul.bf16.gmra.mxu0 %v1787
      %v1877 = vpop.f32.mrf.mxu0
      %v1878 = vadd.f32 0.0, %v1877
      %v1879 = vpop.f32.mrf.mxu0
      %v1880 = vadd.f32 0.0, %v1879
      %1881 = vdwg.mxu0
      %v1882 = vadd.f32 %v1768, %v1863
      %v1883 = vadd.f32 %v1769, %v1865
      %v1884 = vadd.f32 %v1770, %v1868
      %v1885 = vadd.f32 %v1771, %v1870
      %v1886 = vadd.f32 %v1772, %v1873
      %v1887 = vadd.f32 %v1773, %v1875
      %v1888 = vadd.f32 %v1774, %v1878
      %v1889 = vadd.f32 %v1775, %v1880
      %v1890 = vld [vmem:[#allocation3 + $0xa] sm:$0xff]
      %v1891 = vld [vmem:[#allocation3 + $0x12] sm:$0xff]
      %v1892 = vld [vmem:[#allocation3 + $0x1a] sm:$0xff]
      %v1893 = vld [vmem:[#allocation3 + $0x22] sm:$0xff]
      %v1894 = vld [vmem:[#allocation3 + $0x2a] sm:$0xff]
      %v1895 = vld [vmem:[#allocation3 + $0x32] sm:$0xff]
      %v1896 = vld [vmem:[#allocation3 + $0x3a] sm:$0xff]
      %v1897 = vld [vmem:[#allocation3 + $0x42] sm:$0xff]
      %v1898 = vmul.f32 %v1890, %v1503
      %v1899 = vmul.f32 %v1891, %v1508
      %v1900 = vmul.f32 %v1892, %v1513
      %v1901 = vmul.f32 %v1893, %v1518
      %v1902 = vmul.f32 %v1894, %v1523
      %v1903 = vmul.f32 %v1895, %v1528
      %v1904 = vmul.f32 %v1896, %v1533
      %v1905 = vmul.f32 %v1897, %v1538
      %v1906 = vpack.c.bf16 %v1899, %v1898
      %v1907 = vpack.c.bf16 %v1901, %v1900
      %v1908 = vpack.c.bf16 %v1903, %v1902
      %v1909 = vpack.c.bf16 %v1905, %v1904
      %s1910 = scalar_lea.vmem %s5, 320
      %v1911 = vld [vmem:[%s1910] sm:$0xf]
      %v1912 = vld [vmem:[%s1910 + $0x4] sm:$0xf]
      %v1913 = vld [vmem:[%s1910 + $0x8] sm:$0xf]
      %v1914 = vld [vmem:[%s1910 + $0xc] sm:$0xf]
      %v1915 = vld [vmem:[%s1910 + $0x10] sm:$0xf]
      %v1916 = vld [vmem:[%s1910 + $0x14] sm:$0xf]
      %v1917 = vld [vmem:[%s1910 + $0x18] sm:$0xf]
      %v1918 = vld [vmem:[%s1910 + $0x1c] sm:$0xf]
      %v1919 = vld [vmem:[%s1910 + $0x20] sm:$0xf]
      %v1920 = vld [vmem:[%s1910 + $0x24] sm:$0xf]
      %v1921 = vld [vmem:[%s1910 + $0x28] sm:$0xf]
      %v1922 = vld [vmem:[%s1910 + $0x2c] sm:$0xf]
      %v1923 = vld [vmem:[%s1910 + $0x30] sm:$0xf]
      %v1924 = vld [vmem:[%s1910 + $0x34] sm:$0xf]
      %v1925 = vld [vmem:[%s1910 + $0x38] sm:$0xf]
      %v1926 = vld [vmem:[%s1910 + $0x3c] sm:$0xf]
      %v1943 = vunpack.c.l.b16 %v1911
      %v1944 = vunpack.c.l.b16 %v1912
      %v1945 = vunpack.c.l.b16 %v1913
      %v1946 = vunpack.c.l.b16 %v1914
      %v1947 = vunpack.c.l.b16 %v1915
      %v1948 = vunpack.c.l.b16 %v1916
      %v1949 = vunpack.c.l.b16 %v1917
      %v1950 = vunpack.c.l.b16 %v1918
      %v1951 = vunpack.c.l.b16 %v1919
      %v1952 = vunpack.c.l.b16 %v1920
      %v1953 = vunpack.c.l.b16 %v1921
      %v1954 = vunpack.c.l.b16 %v1922
      %v1955 = vunpack.c.l.b16 %v1923
      %v1956 = vunpack.c.l.b16 %v1924
      %v1957 = vunpack.c.l.b16 %v1925
      %v1958 = vunpack.c.l.b16 %v1926
      %v1959 = vpack.c.b16 %v1944, %v1943
      %v1960 = vpack.c.b16 %v1946, %v1945
      %v1961 = vpack.c.b16 %v1948, %v1947
      %v1962 = vpack.c.b16 %v1950, %v1949
      %v1963 = vpack.c.b16 %v1952, %v1951
      %v1964 = vpack.c.b16 %v1954, %v1953
      %v1965 = vpack.c.b16 %v1956, %v1955
      %v1966 = vpack.c.b16 %v1958, %v1957
      %1975 = vmatpush.bf16.msra.mxu0 %v1966
      %1976 = vmatpush.bf16.msra.mxu0 %v1965
      %1977 = vmatpush.bf16.msra.mxu0 %v1964
      %1978 = vmatpush.bf16.msra.mxu0 %v1963
      %1979 = vmatpush.bf16.msra.mxu0 %v1962
      %1980 = vmatpush.bf16.msra.mxu0 %v1961
      %1981 = vmatpush.bf16.msra.mxu0 %v1960
      %1982 = vmatpush.bf16.msra.mxu0 %v1959
      %1983 = vmatmul.bf16.gmra.mxu0 %v1906
      %v1984 = vpop.f32.mrf.mxu0
      %v1985 = vadd.f32 0.0, %v1984
      %v1986 = vpop.f32.mrf.mxu0
      %v1987 = vadd.f32 0.0, %v1986
      %1988 = vmatmul.bf16.gmra.mxu0 %v1907
      %v1989 = vpop.f32.mrf.mxu0
      %v1990 = vadd.f32 0.0, %v1989
      %v1991 = vpop.f32.mrf.mxu0
      %v1992 = vadd.f32 0.0, %v1991
      %1993 = vmatmul.bf16.gmra.mxu0 %v1908
      %v1994 = vpop.f32.mrf.mxu0
      %v1995 = vadd.f32 0.0, %v1994
      %v1996 = vpop.f32.mrf.mxu0
      %v1997 = vadd.f32 0.0, %v1996
      %1998 = vmatmul.bf16.gmra.mxu0 %v1909
      %v1999 = vpop.f32.mrf.mxu0
      %v2000 = vadd.f32 0.0, %v1999
      %v2001 = vpop.f32.mrf.mxu0
      %v2002 = vadd.f32 0.0, %v2001
      %2003 = vdwg.mxu0
      %v2004 = vadd.f32 %v1882, %v1985
      %v2005 = vadd.f32 %v1883, %v1987
      %v2006 = vadd.f32 %v1884, %v1990
      %v2007 = vadd.f32 %v1885, %v1992
      %v2008 = vadd.f32 %v1886, %v1995
      %v2009 = vadd.f32 %v1887, %v1997
      %v2010 = vadd.f32 %v1888, %v2000
      %v2011 = vadd.f32 %v1889, %v2002
      %v2012 = vld [vmem:[#allocation3 + $0x10] sm:$0xff]
      %v2013 = vld [vmem:[#allocation3 + $0x18] sm:$0xff]
      %v2014 = vld [vmem:[#allocation3 + $0x20] sm:$0xff]
      %v2015 = vld [vmem:[#allocation3 + $0x28] sm:$0xff]
      %v2016 = vld [vmem:[#allocation3 + $0x30] sm:$0xff]
      %v2017 = vld [vmem:[#allocation3 + $0x38] sm:$0xff]
      %v2018 = vld [vmem:[#allocation3 + $0x40] sm:$0xff]
      %v2019 = vld [vmem:[#allocation3 + $0x48] sm:$0xff]
      %v2020 = vmul.f32 %v2012, %v1235
      %v2021 = vmul.f32 %v2013, %v1240
      %v2022 = vmul.f32 %v2014, %v1245
      %v2023 = vmul.f32 %v2015, %v1250
      %v2024 = vmul.f32 %v2016, %v1255
      %v2025 = vmul.f32 %v2017, %v1260
      %v2026 = vmul.f32 %v2018, %v1265
      %v2027 = vmul.f32 %v2019, %v1270
      %v2028 = vpack.c.bf16 %v2021, %v2020
      %v2029 = vpack.c.bf16 %v2023, %v2022
      %v2030 = vpack.c.bf16 %v2025, %v2024
      %v2031 = vpack.c.bf16 %v2027, %v2026
      %s2032 = scalar_lea.vmem %s5, 384
      %v2033 = vld [vmem:[%s2032] sm:$0xf]
      %v2034 = vld [vmem:[%s2032 + $0x4] sm:$0xf]
      %v2035 = vld [vmem:[%s2032 + $0x8] sm:$0xf]
      %v2036 = vld [vmem:[%s2032 + $0xc] sm:$0xf]
      %v2037 = vld [vmem:[%s2032 + $0x10] sm:$0xf]
      %v2038 = vld [vmem:[%s2032 + $0x14] sm:$0xf]
      %v2039 = vld [vmem:[%s2032 + $0x18] sm:$0xf]
      %v2040 = vld [vmem:[%s2032 + $0x1c] sm:$0xf]
      %v2041 = vld [vmem:[%s2032 + $0x20] sm:$0xf]
      %v2042 = vld [vmem:[%s2032 + $0x24] sm:$0xf]
      %v2043 = vld [vmem:[%s2032 + $0x28] sm:$0xf]
      %v2044 = vld [vmem:[%s2032 + $0x2c] sm:$0xf]
      %v2045 = vld [vmem:[%s2032 + $0x30] sm:$0xf]
      %v2046 = vld [vmem:[%s2032 + $0x34] sm:$0xf]
      %v2047 = vld [vmem:[%s2032 + $0x38] sm:$0xf]
      %v2048 = vld [vmem:[%s2032 + $0x3c] sm:$0xf]
      %v2065 = vunpack.c.l.b16 %v2033
      %v2066 = vunpack.c.l.b16 %v2034
      %v2067 = vunpack.c.l.b16 %v2035
      %v2068 = vunpack.c.l.b16 %v2036
      %v2069 = vunpack.c.l.b16 %v2037
      %v2070 = vunpack.c.l.b16 %v2038
      %v2071 = vunpack.c.l.b16 %v2039
      %v2072 = vunpack.c.l.b16 %v2040
      %v2073 = vunpack.c.l.b16 %v2041
      %v2074 = vunpack.c.l.b16 %v2042
      %v2075 = vunpack.c.l.b16 %v2043
      %v2076 = vunpack.c.l.b16 %v2044
      %v2077 = vunpack.c.l.b16 %v2045
      %v2078 = vunpack.c.l.b16 %v2046
      %v2079 = vunpack.c.l.b16 %v2047
      %v2080 = vunpack.c.l.b16 %v2048
      %v2081 = vpack.c.b16 %v2066, %v2065
      %v2082 = vpack.c.b16 %v2068, %v2067
      %v2083 = vpack.c.b16 %v2070, %v2069
      %v2084 = vpack.c.b16 %v2072, %v2071
      %v2085 = vpack.c.b16 %v2074, %v2073
      %v2086 = vpack.c.b16 %v2076, %v2075
      %v2087 = vpack.c.b16 %v2078, %v2077
      %v2088 = vpack.c.b16 %v2080, %v2079
      %2097 = vmatpush.bf16.msra.mxu0 %v2088
      %2098 = vmatpush.bf16.msra.mxu0 %v2087
      %2099 = vmatpush.bf16.msra.mxu0 %v2086
      %2100 = vmatpush.bf16.msra.mxu0 %v2085
      %2101 = vmatpush.bf16.msra.mxu0 %v2084
      %2102 = vmatpush.bf16.msra.mxu0 %v2083
      %2103 = vmatpush.bf16.msra.mxu0 %v2082
      %2104 = vmatpush.bf16.msra.mxu0 %v2081
      %2105 = vmatmul.bf16.gmra.mxu0 %v2028
      %v2106 = vpop.f32.mrf.mxu0
      %v2107 = vadd.f32 0.0, %v2106
      %v2108 = vpop.f32.mrf.mxu0
      %v2109 = vadd.f32 0.0, %v2108
      %2110 = vmatmul.bf16.gmra.mxu0 %v2029
      %v2111 = vpop.f32.mrf.mxu0
      %v2112 = vadd.f32 0.0, %v2111
      %v2113 = vpop.f32.mrf.mxu0
      %v2114 = vadd.f32 0.0, %v2113
      %2115 = vmatmul.bf16.gmra.mxu0 %v2030
      %v2116 = vpop.f32.mrf.mxu0
      %v2117 = vadd.f32 0.0, %v2116
      %v2118 = vpop.f32.mrf.mxu0
      %v2119 = vadd.f32 0.0, %v2118
      %2120 = vmatmul.bf16.gmra.mxu0 %v2031
      %v2121 = vpop.f32.mrf.mxu0
      %v2122 = vadd.f32 0.0, %v2121
      %v2123 = vpop.f32.mrf.mxu0
      %v2124 = vadd.f32 0.0, %v2123
      %2125 = vdwg.mxu0
      %v2126 = vadd.f32 %v2004, %v2107
      %v2127 = vadd.f32 %v2005, %v2109
      %v2128 = vadd.f32 %v2006, %v2112
      %v2129 = vadd.f32 %v2007, %v2114
      %v2130 = vadd.f32 %v2008, %v2117
      %v2131 = vadd.f32 %v2009, %v2119
      %v2132 = vadd.f32 %v2010, %v2122
      %v2133 = vadd.f32 %v2011, %v2124
      %v2134 = vld [vmem:[#allocation3 + $0x11] sm:$0xff]
      %v2135 = vld [vmem:[#allocation3 + $0x19] sm:$0xff]
      %v2136 = vld [vmem:[#allocation3 + $0x21] sm:$0xff]
      %v2137 = vld [vmem:[#allocation3 + $0x29] sm:$0xff]
      %v2138 = vld [vmem:[#allocation3 + $0x31] sm:$0xff]
      %v2139 = vld [vmem:[#allocation3 + $0x39] sm:$0xff]
      %v2140 = vld [vmem:[#allocation3 + $0x41] sm:$0xff]
      %v2141 = vld [vmem:[#allocation3 + $0x49] sm:$0xff]
      %v2142 = vpack.c.bf16 %v2135, %v2134
      %v2143 = vpack.c.bf16 %v2137, %v2136
      %v2144 = vpack.c.bf16 %v2139, %v2138
      %v2145 = vpack.c.bf16 %v2141, %v2140
      %s2146 = scalar_lea.vmem %s5, 448
      %v2147 = vld [vmem:[%s2146] sm:$0xf]
      %v2148 = vld [vmem:[%s2146 + $0x4] sm:$0xf]
      %v2149 = vld [vmem:[%s2146 + $0x8] sm:$0xf]
      %v2150 = vld [vmem:[%s2146 + $0xc] sm:$0xf]
      %v2151 = vld [vmem:[%s2146 + $0x10] sm:$0xf]
      %v2152 = vld [vmem:[%s2146 + $0x14] sm:$0xf]
      %v2153 = vld [vmem:[%s2146 + $0x18] sm:$0xf]
      %v2154 = vld [vmem:[%s2146 + $0x1c] sm:$0xf]
      %v2155 = vld [vmem:[%s2146 + $0x20] sm:$0xf]
      %v2156 = vld [vmem:[%s2146 + $0x24] sm:$0xf]
      %v2157 = vld [vmem:[%s2146 + $0x28] sm:$0xf]
      %v2158 = vld [vmem:[%s2146 + $0x2c] sm:$0xf]
      %v2159 = vld [vmem:[%s2146 + $0x30] sm:$0xf]
      %v2160 = vld [vmem:[%s2146 + $0x34] sm:$0xf]
      %v2161 = vld [vmem:[%s2146 + $0x38] sm:$0xf]
      %v2162 = vld [vmem:[%s2146 + $0x3c] sm:$0xf]
      %v2179 = vunpack.c.l.b16 %v2147
      %v2180 = vunpack.c.l.b16 %v2148
      %v2181 = vunpack.c.l.b16 %v2149
      %v2182 = vunpack.c.l.b16 %v2150
      %v2183 = vunpack.c.l.b16 %v2151
      %v2184 = vunpack.c.l.b16 %v2152
      %v2185 = vunpack.c.l.b16 %v2153
      %v2186 = vunpack.c.l.b16 %v2154
      %v2187 = vunpack.c.l.b16 %v2155
      %v2188 = vunpack.c.l.b16 %v2156
      %v2189 = vunpack.c.l.b16 %v2157
      %v2190 = vunpack.c.l.b16 %v2158
      %v2191 = vunpack.c.l.b16 %v2159
      %v2192 = vunpack.c.l.b16 %v2160
      %v2193 = vunpack.c.l.b16 %v2161
      %v2194 = vunpack.c.l.b16 %v2162
      %v2195 = vpack.c.b16 %v2180, %v2179
      %v2196 = vpack.c.b16 %v2182, %v2181
      %v2197 = vpack.c.b16 %v2184, %v2183
      %v2198 = vpack.c.b16 %v2186, %v2185
      %v2199 = vpack.c.b16 %v2188, %v2187
      %v2200 = vpack.c.b16 %v2190, %v2189
      %v2201 = vpack.c.b16 %v2192, %v2191
      %v2202 = vpack.c.b16 %v2194, %v2193
      %2211 = vmatpush.bf16.msra.mxu0 %v2202
      %2212 = vmatpush.bf16.msra.mxu0 %v2201
      %2213 = vmatpush.bf16.msra.mxu0 %v2200
      %2214 = vmatpush.bf16.msra.mxu0 %v2199
      %2215 = vmatpush.bf16.msra.mxu0 %v2198
      %2216 = vmatpush.bf16.msra.mxu0 %v2197
      %2217 = vmatpush.bf16.msra.mxu0 %v2196
      %2218 = vmatpush.bf16.msra.mxu0 %v2195
      %2219 = vmatmul.bf16.gmra.mxu0 %v2142
      %v2220 = vpop.f32.mrf.mxu0
      %v2221 = vadd.f32 0.0, %v2220
      %v2222 = vpop.f32.mrf.mxu0
      %v2223 = vadd.f32 0.0, %v2222
      %2224 = vmatmul.bf16.gmra.mxu0 %v2143
      %v2225 = vpop.f32.mrf.mxu0
      %v2226 = vadd.f32 0.0, %v2225
      %v2227 = vpop.f32.mrf.mxu0
      %v2228 = vadd.f32 0.0, %v2227
      %2229 = vmatmul.bf16.gmra.mxu0 %v2144
      %v2230 = vpop.f32.mrf.mxu0
      %v2231 = vadd.f32 0.0, %v2230
      %v2232 = vpop.f32.mrf.mxu0
      %v2233 = vadd.f32 0.0, %v2232
      %2234 = vmatmul.bf16.gmra.mxu0 %v2145
      %v2235 = vpop.f32.mrf.mxu0
      %v2236 = vadd.f32 0.0, %v2235
      %v2237 = vpop.f32.mrf.mxu0
      %v2238 = vadd.f32 0.0, %v2237
      %2239 = vdwg.mxu0
      %v2240 = vadd.f32 %v2126, %v2221
      %v2241 = vadd.f32 %v2127, %v2223
      %v2242 = vadd.f32 %v2128, %v2226
      %v2243 = vadd.f32 %v2129, %v2228
      %v2244 = vadd.f32 %v2130, %v2231
      %v2245 = vadd.f32 %v2131, %v2233
      %v2246 = vadd.f32 %v2132, %v2236
      %v2247 = vadd.f32 %v2133, %v2238
      %v2248 = vld [vmem:[#allocation3 + $0x12] sm:$0xff]
      %v2249 = vld [vmem:[#allocation3 + $0x1a] sm:$0xff]
      %v2250 = vld [vmem:[#allocation3 + $0x22] sm:$0xff]
      %v2251 = vld [vmem:[#allocation3 + $0x2a] sm:$0xff]
      %v2252 = vld [vmem:[#allocation3 + $0x32] sm:$0xff]
      %v2253 = vld [vmem:[#allocation3 + $0x3a] sm:$0xff]
      %v2254 = vld [vmem:[#allocation3 + $0x42] sm:$0xff]
      %v2255 = vld [vmem:[#allocation3 + $0x4a] sm:$0xff]
      %v2256 = vmul.f32 %v2248, %v1503
      %v2257 = vmul.f32 %v2249, %v1508
      %v2258 = vmul.f32 %v2250, %v1513
      %v2259 = vmul.f32 %v2251, %v1518
      %v2260 = vmul.f32 %v2252, %v1523
      %v2261 = vmul.f32 %v2253, %v1528
      %v2262 = vmul.f32 %v2254, %v1533
      %v2263 = vmul.f32 %v2255, %v1538
      %v2264 = vpack.c.bf16 %v2257, %v2256
      %v2265 = vpack.c.bf16 %v2259, %v2258
      %v2266 = vpack.c.bf16 %v2261, %v2260
      %v2267 = vpack.c.bf16 %v2263, %v2262
      %s2268 = scalar_lea.vmem %s5, 512
      %v2269 = vld [vmem:[%s2268] sm:$0xf]
      %v2270 = vld [vmem:[%s2268 + $0x4] sm:$0xf]
      %v2271 = vld [vmem:[%s2268 + $0x8] sm:$0xf]
      %v2272 = vld [vmem:[%s2268 + $0xc] sm:$0xf]
      %v2273 = vld [vmem:[%s2268 + $0x10] sm:$0xf]
      %v2274 = vld [vmem:[%s2268 + $0x14] sm:$0xf]
      %v2275 = vld [vmem:[%s2268 + $0x18] sm:$0xf]
      %v2276 = vld [vmem:[%s2268 + $0x1c] sm:$0xf]
      %v2277 = vld [vmem:[%s2268 + $0x20] sm:$0xf]
      %v2278 = vld [vmem:[%s2268 + $0x24] sm:$0xf]
      %v2279 = vld [vmem:[%s2268 + $0x28] sm:$0xf]
      %v2280 = vld [vmem:[%s2268 + $0x2c] sm:$0xf]
      %v2281 = vld [vmem:[%s2268 + $0x30] sm:$0xf]
      %v2282 = vld [vmem:[%s2268 + $0x34] sm:$0xf]
      %v2283 = vld [vmem:[%s2268 + $0x38] sm:$0xf]
      %v2284 = vld [vmem:[%s2268 + $0x3c] sm:$0xf]
      %v2301 = vunpack.c.l.b16 %v2269
      %v2302 = vunpack.c.l.b16 %v2270
      %v2303 = vunpack.c.l.b16 %v2271
      %v2304 = vunpack.c.l.b16 %v2272
      %v2305 = vunpack.c.l.b16 %v2273
      %v2306 = vunpack.c.l.b16 %v2274
      %v2307 = vunpack.c.l.b16 %v2275
      %v2308 = vunpack.c.l.b16 %v2276
      %v2309 = vunpack.c.l.b16 %v2277
      %v2310 = vunpack.c.l.b16 %v2278
      %v2311 = vunpack.c.l.b16 %v2279
      %v2312 = vunpack.c.l.b16 %v2280
      %v2313 = vunpack.c.l.b16 %v2281
      %v2314 = vunpack.c.l.b16 %v2282
      %v2315 = vunpack.c.l.b16 %v2283
      %v2316 = vunpack.c.l.b16 %v2284
      %v2317 = vpack.c.b16 %v2302, %v2301
      %v2318 = vpack.c.b16 %v2304, %v2303
      %v2319 = vpack.c.b16 %v2306, %v2305
      %v2320 = vpack.c.b16 %v2308, %v2307
      %v2321 = vpack.c.b16 %v2310, %v2309
      %v2322 = vpack.c.b16 %v2312, %v2311
      %v2323 = vpack.c.b16 %v2314, %v2313
      %v2324 = vpack.c.b16 %v2316, %v2315
      %2333 = vmatpush.bf16.msra.mxu0 %v2324
      %2334 = vmatpush.bf16.msra.mxu0 %v2323
      %2335 = vmatpush.bf16.msra.mxu0 %v2322
      %2336 = vmatpush.bf16.msra.mxu0 %v2321
      %2337 = vmatpush.bf16.msra.mxu0 %v2320
      %2338 = vmatpush.bf16.msra.mxu0 %v2319
      %2339 = vmatpush.bf16.msra.mxu0 %v2318
      %2340 = vmatpush.bf16.msra.mxu0 %v2317
      %2341 = vmatmul.bf16.gmra.mxu0 %v2264
      %v2342 = vpop.f32.mrf.mxu0
      %v2343 = vadd.f32 0.0, %v2342
      %v2344 = vpop.f32.mrf.mxu0
      %v2345 = vadd.f32 0.0, %v2344
      %2346 = vmatmul.bf16.gmra.mxu0 %v2265
      %v2347 = vpop.f32.mrf.mxu0
      %v2348 = vadd.f32 0.0, %v2347
      %v2349 = vpop.f32.mrf.mxu0
      %v2350 = vadd.f32 0.0, %v2349
      %2351 = vmatmul.bf16.gmra.mxu0 %v2266
      %v2352 = vpop.f32.mrf.mxu0
      %v2353 = vadd.f32 0.0, %v2352
      %v2354 = vpop.f32.mrf.mxu0
      %v2355 = vadd.f32 0.0, %v2354
      %2356 = vmatmul.bf16.gmra.mxu0 %v2267
      %v2357 = vpop.f32.mrf.mxu0
      %v2358 = vadd.f32 0.0, %v2357
      %v2359 = vpop.f32.mrf.mxu0
      %v2360 = vadd.f32 0.0, %v2359
      %2361 = vdwg.mxu0
      %v2362 = vadd.f32 %v2240, %v2343
      %v2363 = vadd.f32 %v2241, %v2345
      %v2364 = vadd.f32 %v2242, %v2348
      %v2365 = vadd.f32 %v2243, %v2350
      %v2366 = vadd.f32 %v2244, %v2353
      %v2367 = vadd.f32 %v2245, %v2355
      %v2368 = vadd.f32 %v2246, %v2358
      %v2369 = vadd.f32 %v2247, %v2360
      %v2370 = vld [vmem:[#allocation2 + $0x9] sm:$0xff]
      %v2371 = vld [vmem:[#allocation2 + $0x11] sm:$0xff]
      %v2372 = vld [vmem:[#allocation2 + $0x19] sm:$0xff]
      %v2373 = vld [vmem:[#allocation2 + $0x21] sm:$0xff]
      %v2374 = vld [vmem:[#allocation2 + $0x29] sm:$0xff]
      %v2375 = vld [vmem:[#allocation2 + $0x31] sm:$0xff]
      %v2376 = vld [vmem:[#allocation2 + $0x39] sm:$0xff]
      %v2377 = vld [vmem:[#allocation2 + $0x41] sm:$0xff]
      %v2378 = vpack.c.bf16 %v2371, %v2370
      %v2379 = vpack.c.bf16 %v2373, %v2372
      %v2380 = vpack.c.bf16 %v2375, %v2374
      %v2381 = vpack.c.bf16 %v2377, %v2376
      %v2382 = vld [vmem:[%s6] sm:$0x3]
      %v2384 = vsel %vm307, %v2378, 0
      %v2387 = vsel %vm307, %v2379, 0
      %v2390 = vsel %vm307, %v2380, 0
      %v2393 = vsel %vm307, %v2381, 0
      %v2396 = vsel %vm622, %v2382, 0
      %2398 = vmatpush.bf16.msra.mxu0 0
      %2399 = vmatpush.bf16.msra.mxu0 0
      %2400 = vmatpush.bf16.msra.mxu0 0
      %2401 = vmatpush.bf16.msra.mxu0 0
      %2402 = vmatpush.bf16.msra.mxu0 0
      %2403 = vmatpush.bf16.msra.mxu0 0
      %2404 = vmatpush.bf16.msra.mxu0 0
      %2405 = vmatpush.bf16.msra.mxu0 %v2396
      %2406 = vmatmul.bf16.gmra.mxu0 %v2384
      %v2407 = vpop.f32.mrf.mxu0
      %v2408 = vadd.f32 0.0, %v2407
      %v2409 = vpop.f32.mrf.mxu0
      %v2410 = vadd.f32 0.0, %v2409
      %2411 = vmatmul.bf16.gmra.mxu0 %v2387
      %v2412 = vpop.f32.mrf.mxu0
      %v2413 = vadd.f32 0.0, %v2412
      %v2414 = vpop.f32.mrf.mxu0
      %v2415 = vadd.f32 0.0, %v2414
      %2416 = vmatmul.bf16.gmra.mxu0 %v2390
      %v2417 = vpop.f32.mrf.mxu0
      %v2418 = vadd.f32 0.0, %v2417
      %v2419 = vpop.f32.mrf.mxu0
      %v2420 = vadd.f32 0.0, %v2419
      %2421 = vmatmul.bf16.gmra.mxu0 %v2393
      %v2422 = vpop.f32.mrf.mxu0
      %v2423 = vadd.f32 0.0, %v2422
      %v2424 = vpop.f32.mrf.mxu0
      %v2425 = vadd.f32 0.0, %v2424
      %2426 = vdwg.mxu0
      %v2427 = vadd.f32 %v2362, %v2408
      %v2428 = vadd.f32 %v2363, %v2410
      %v2429 = vadd.f32 %v2364, %v2413
      %v2430 = vadd.f32 %v2365, %v2415
      %v2431 = vadd.f32 %v2366, %v2418
      %v2432 = vadd.f32 %v2367, %v2420
      %v2433 = vadd.f32 %v2368, %v2423
      %v2434 = vadd.f32 %v2369, %v2425
      %2435 = vst [vmem:[%s305] sm:$0xff] %v2427
      %2436 = vst [vmem:[%s305 + $0x8] sm:$0xff] %v2428
      %2437 = vst [vmem:[%s305 + $0x10] sm:$0xff] %v2429
      %2438 = vst [vmem:[%s305 + $0x18] sm:$0xff] %v2430
      %2439 = vst [vmem:[%s305 + $0x20] sm:$0xff] %v2431
      %2440 = vst [vmem:[%s305 + $0x28] sm:$0xff] %v2432
      %2441 = vst [vmem:[%s305 + $0x30] sm:$0xff] %v2433
      %2442 = vst [vmem:[%s305 + $0x38] sm:$0xff] %v2434
      %p2443 = scmp.lt.s32.totalorder %s19, 1
      %s2444 = scalar_select %p2443, %s19, 1
      %s2445 = smul.addr %s2444, 8
      %s2446 = smul.addr %s2445, 8
      %s2447 = scalar_lea.vmem %s8, %s2446
      // Predicated region
      $region53: #{downsample_unit_forward.1} parent=51 // pred_check
        %p2448 = pneg %p210
      $region54: #{downsample_unit_forward.1} parent=51 // pred_check_branch
        %2450 = sbr.rel (%p2448) target = $region56
      $region55: #{downsample_unit_forward.1} parent=51 // pred_region
        _
      $region56: #{downsample_unit_forward.1} parent=51 // pred_fallthru
        _
    $region52: #{downsample_unit_forward.1} parent=5 // pred_fallthru
      _
    %p2451 = scmp.le.s32.totalorder 2, %s14
    // Predicated region
    $region57: #{downsample_unit_forward.1} parent=5 // pred_check
      %p2452 = pneg %p2451
    $region58: #{downsample_unit_forward.1} parent=5 // pred_check_branch
      %2454 = sbr.rel (%p2452) target = $region60
    $region59: #{downsample_unit_forward.1} parent=5 // pred_region
      %s2455 = ssub.s32 %s14, 2
      // Predicated region
      $region61: #{downsample_unit_forward.1} parent=59 // pred_check
        %p2456 = pneg %p216
      $region62: #{downsample_unit_forward.1} parent=59 // pred_check_branch
        %2458 = sbr.rel (%p2456) target = $region64
      $region63: #{downsample_unit_forward.1} parent=59 // pred_region
        %p2459 = scmp.lt.s32.totalorder %s20, 1
        %s2460 = scalar_select %p2459, %s20, 1
        %s2461 = smul.addr %s2460, 8
        %s2462 = smul.addr %s2461, 8
        %s2463 = scalar_lea.vmem %s8, %s2462
      $region64: #{downsample_unit_forward.1} parent=59 // pred_fallthru
        _
    $region60: #{downsample_unit_forward.1} parent=5 // pred_fallthru
      _
  $region6: #{downsample_unit_forward.1} parent=0 // loop_footer
    %s18 = sadd.s32 1, %s14
  $region7: #{downsample_unit_forward.1} parent=0 // loop_footer_branch
    %13 = sbr.rel target = $region3
  $region8: #{downsample_unit_forward.1} parent=0 // loop_exit
    _

</llo_original>
